<compile_context>
chip_gen: v7x
topology: tpu7x:2x2x1
jax: 0.10.0
libtpu: 0.0.40
codegen_flags: <defaults>
</compile_context>

<pallas_src>
import math
import functools
import numpy as np
import jax
import jax.numpy as jnp
from jax.experimental import pallas as pl
from jax.experimental.pallas import tpu as pltpu


# ---------------------------------------------------------------------------
# Positional encoding (same formula as the TF-tutorial-derived PyTorch code).
# ---------------------------------------------------------------------------
def positional_encoding(max_pos, d_model):
    pos = np.arange(max_pos)[:, None].astype(np.float32)
    i = np.arange(d_model)[None, :].astype(np.float32)
    angle_rates = 1.0 / np.power(10000.0, (2.0 * np.floor(i / 2.0)) / d_model)
    angle_rads = pos * angle_rates
    pe = np.zeros((max_pos, d_model), dtype=np.float32)
    pe[:, 0::2] = np.sin(angle_rads[:, 0::2])
    pe[:, 1::2] = np.cos(angle_rads[:, 1::2])
    return jnp.asarray(pe[None, :, :])  # (1, max_pos, d_model)


# ---------------------------------------------------------------------------
# In-kernel LayerNorm (rsqrt -> EUP, keeps VALU free).
# ---------------------------------------------------------------------------
def _layer_norm(x, gamma, beta, eps):
    mu = jnp.mean(x, axis=-1, keepdims=True)
    xc = x - mu
    var = jnp.mean(xc * xc, axis=-1, keepdims=True)
    return xc * jax.lax.rsqrt(var + eps) * gamma + beta


# ---------------------------------------------------------------------------
# Kernel: one (batch, layer) grid step = one encoder layer on one sequence.
# Activation persists in VMEM scratch across the layer axis.
# ---------------------------------------------------------------------------
def _encoder_layer_kernel(x_ref, pos_ref, bias_ref,
                          wqkv_ref, bqkv_ref, wo_ref, bo_ref,
                          w1_ref, b1_ref, w2_ref, b2_ref,
                          g1_ref, be1_ref, g2_ref, be2_ref,
                          o_ref, x_sc, *, num_heads, head_dim, d_model,
                          scale, eps):
    bf16, f32 = jnp.bfloat16, jnp.float32
    H, hd, D = num_heads, head_dim, d_model
    S = x_sc.shape[0]
    inv_sqrt_dk = 1.0 / math.sqrt(hd)
    l = pl.program_id(1)

    # First layer of this batch element: embedding scale + positional add.
    @pl.when(l == 0)
    def _():
        x_sc[...] = x_ref[...] * scale + pos_ref[...]

    x = x_sc[...]                       # (S, D) f32
    bias = bias_ref[...]                # (1, S) f32  (key padding * -1e9)

    # ---- multi-head self-attention -------------------------------------
    # Single fused QKV projection (one big MXU push), then one relayout to a
    # heads-leading layout so the score/PV matmuls batch over heads.
    qkv = jnp.dot(x.astype(bf16), wqkv_ref[...],
                  preferred_element_type=f32) + bqkv_ref[...]      # (S, 3D)
    qkv_h = jnp.transpose(qkv.reshape(S, 3 * H, hd),
                          (1, 0, 2)).astype(bf16)                  # (3H, S, hd)
    q = qkv_h[:H]                                                  # (H, S, hd)
    k = qkv_h[H:2 * H]
    v = qkv_h[2 * H:]

    s = jnp.einsum('hqd,hkd->hqk', q, k,
                   preferred_element_type=f32)                     # (H, S, S)
    s = s * inv_sqrt_dk + bias                                     # bias bcast
    s = s - jnp.max(s, axis=-1, keepdims=True)
    e = jnp.exp(s)
    p = e * pl.reciprocal(jnp.sum(e, axis=-1, keepdims=True), approx=True)

    ctx = jnp.einsum('hqk,hkd->hqd', p.astype(bf16), v,
                     preferred_element_type=f32)                   # (H, S, hd)
    ctx = jnp.transpose(ctx, (1, 0, 2)).reshape(S, D)              # (S, D)

    # Single output projection with K = D (better MXU fill than per-head K=hd).
    attn = jnp.dot(ctx.astype(bf16), wo_ref[...],
                   preferred_element_type=f32) + bo_ref[...]
    y1 = _layer_norm(x + attn, g1_ref[...], be1_ref[...], eps)

    # ---- position-wise feed-forward -------------------------------------
    h1 = jnp.maximum(
        jnp.dot(y1.astype(bf16), w1_ref[...], preferred_element_type=f32)
        + b1_ref[...], 0.0)
    h2 = jnp.dot(h1.astype(bf16), w2_ref[...],
                 preferred_element_type=f32) + b2_ref[...]
    x_new = _layer_norm(y1 + h2, g2_ref[...], be2_ref[...], eps)

    x_sc[...] = x_new

    @pl.when(l == pl.num_programs(1) - 1)
    def _():
        o_ref[...] = x_new


# ---------------------------------------------------------------------------
# Host-side parameter packing: stack per-layer params along a leading layer
# axis; fuse wq|wk|wv so a single matmul produces QKV.
# ---------------------------------------------------------------------------
def pack_layer_params(layer_params, matmul_dtype=jnp.bfloat16):
    stack = lambda fn: jnp.stack([fn(p) for p in layer_params])
    row = lambda fn: jnp.stack([fn(p)[None, :] for p in layer_params])  # (L,1,X)
    return dict(
        wqkv=stack(lambda p: jnp.concatenate([p["wq"], p["wk"], p["wv"]],
                                             axis=1)).astype(matmul_dtype),
        bqkv=row(lambda p: jnp.concatenate([p["bq"], p["bk"], p["bv"]])),
        wo=stack(lambda p: p["wo"]).astype(matmul_dtype),
        bo=row(lambda p: p["bo"]),
        w1=stack(lambda p: p["w1"]).astype(matmul_dtype),
        b1=row(lambda p: p["b1"]),
        w2=stack(lambda p: p["w2"]).astype(matmul_dtype),
        b2=row(lambda p: p["b2"]),
        g1=row(lambda p: p["g1"]), be1=row(lambda p: p["be1"]),
        g2=row(lambda p: p["g2"]), be2=row(lambda p: p["be2"]),
    )


def _vmem_limit_bytes(S, D, dff):
    """VMEM budget: 2 layers of streamed weights + activation working set."""
    per_layer_weights = 2 * (D * 3 * D + D * D + 2 * D * dff)       # bf16
    per_layer_vectors = 4 * (3 * D + 6 * D + dff)                   # f32
    activations = 4 * (6 * S * D + 2 * S * dff + 8 * S * S)         # f32, rough
    total = 2 * (per_layer_weights + per_layer_vectors) + activations + (8 << 20)
    return int(min(max(total, 16 << 20), 48 << 20))                 # v7x-safe cap


# ---------------------------------------------------------------------------
# Encoder.forward — one pallas_call over a (batch, layer) grid.
# ---------------------------------------------------------------------------
def encoder_forward(tokens, mask, word_emb, pos_encoding, packed, *,
                    d_model, num_heads, num_layers, eps=1e-6):
    B, S = tokens.shape
    D = d_model
    dff = packed["w1"].shape[2]

    # host-side glue: embedding gather, pos slice, per-batch key-padding bias
    x_emb = jnp.take(word_emb, tokens, axis=0)                      # (B, S, D)
    pos = pos_encoding[0, :S, :]                                    # (S, D)
    key_bias = mask[:, :1, :].astype(jnp.float32) * jnp.float32(-1e9)  # (B,1,S)

    operands = (x_emb, pos, key_bias,
                packed["wqkv"], packed["bqkv"], packed["wo"], packed["bo"],
                packed["w1"], packed["b1"], packed["w2"], packed["b2"],
                packed["g1"], packed["be1"], packed["g2"], packed["be2"])

    def batch_spec(shape):      # index by batch, constant across layers
        nd = len(shape)
        return pl.BlockSpec((None,) + tuple(shape[1:]),
                            lambda b, l, nd=nd: (b,) + (0,) * (nd - 1))

    def layer_spec(shape):      # stream per-layer weights along the layer axis
        nd = len(shape)
        return pl.BlockSpec((None,) + tuple(shape[1:]),
                            lambda b, l, nd=nd: (l,) + (0,) * (nd - 1))

    in_specs = [
        batch_spec(x_emb.shape),
        pl.BlockSpec(pos.shape, lambda b, l: (0, 0)),
        batch_spec(key_bias.shape),
    ] + [layer_spec(packed[k].shape) for k in
         ("wqkv", "bqkv", "wo", "bo", "w1", "b1", "w2", "b2",
          "g1", "be1", "g2", "be2")]

    out = pl.pallas_call(
        functools.partial(_encoder_layer_kernel,
                          num_heads=num_heads, head_dim=D // num_heads,
                          d_model=D, scale=math.sqrt(D), eps=eps),
        out_shape=jax.ShapeDtypeStruct((B, S, D), jnp.float32),
        grid=(B, num_layers),
        in_specs=in_specs,
        out_specs=pl.BlockSpec((None, S, D), lambda b, l: (b, 0, 0)),
        scratch_shapes=[pltpu.VMEM((S, D), jnp.float32)],
        compiler_params=pltpu.CompilerParams(
            dimension_semantics=("parallel", "arbitrary"),
            vmem_limit_bytes=_vmem_limit_bytes(S, D, dff)),
    )(*operands)
    return out


# ---------------------------------------------------------------------------
# Pure-JAX reference (f32) for correctness check.
# ---------------------------------------------------------------------------
def ref_encoder_layer(x, mask, p, num_heads, eps=1e-6):
    B, S, D = x.shape
    hd = D // num_heads

    def split(t):
        return t.reshape(B, S, num_heads, hd).transpose(0, 2, 1, 3)

    q = split(x @ p["wq"] + p["bq"])
    k = split(x @ p["wk"] + p["bk"])
    v = split(x @ p["wv"] + p["bv"])
    scores = jnp.einsum("bhqd,bhkd->bhqk", q, k) / math.sqrt(hd)
    scores = scores + mask[:, :, None, :] * (-1e9)
    w = jax.nn.softmax(scores, axis=-1)
    attn = jnp.einsum("bhqk,bhkd->bhqd", w, v).transpose(0, 2, 1, 3).reshape(B, S, D)
    attn = attn @ p["wo"] + p["bo"]

    def ln(t, g, b):
        mu = t.mean(-1, keepdims=True)
        var = ((t - mu) ** 2).mean(-1, keepdims=True)
        return (t - mu) / jnp.sqrt(var + eps) * g + b

    y1 = ln(x + attn, p["g1"], p["be1"])
    h = jax.nn.relu(y1 @ p["w1"] + p["b1"]) @ p["w2"] + p["b2"]
    return ln(y1 + h, p["g2"], p["be2"])


def ref_encoder(tokens, mask, word_emb, pos_encoding, layer_params,
                d_model, num_heads):
    S = tokens.shape[1]
    x = word_emb[tokens] * math.sqrt(d_model) + pos_encoding[:, :S, :]
    for p in layer_params:
        x = ref_encoder_layer(x, mask, p, num_heads)
    return x


# ---------------------------------------------------------------------------
# Deterministic parameter init.
# ---------------------------------------------------------------------------
def init_layer_params(key, d_model, dff):
    ks = jax.random.split(key, 16)
    n = lambda k, shp, s=0.05: (jax.random.normal(k, shp, jnp.float32) * s)
    return dict(
        wq=n(ks[0], (d_model, d_model)), bq=n(ks[1], (d_model,)),
        wk=n(ks[2], (d_model, d_model)), bk=n(ks[3], (d_model,)),
        wv=n(ks[4], (d_model, d_model)), bv=n(ks[5], (d_model,)),
        wo=n(ks[6], (d_model, d_model)), bo=n(ks[7], (d_model,)),
        w1=n(ks[8], (d_model, dff)),     b1=n(ks[9], (dff,)),
        w2=n(ks[10], (dff, d_model)),    b2=n(ks[11], (d_model,)),
        g1=1.0 + n(ks[12], (d_model,), 0.02), be1=n(ks[13], (d_model,), 0.02),
        g2=1.0 + n(ks[14], (d_model,), 0.02), be2=n(ks[15], (d_model,), 0.02),
    )


if __name__ == "__main__":
    num_layers = 2
    d_model = 32
    num_heads = 4
    dff = 64
    input_vocab_size = 50
    maximum_position_encoding = 16
    B, S = 2, 8

    key = jax.random.PRNGKey(0)
    k_emb, k_tok, k_layers = jax.random.split(key, 3)

    word_emb = jax.random.normal(k_emb, (input_vocab_size, d_model), jnp.float32) * 0.1
    pos_enc = positional_encoding(maximum_position_encoding, d_model)

    tokens = jax.random.randint(k_tok, (B, S), 0, input_vocab_size)
    tokens = tokens.at[1, -2:].set(0)                       # force some padding
    # padding mask: 1.0 where token id == 0 (these key positions get -1e9)
    mask = (tokens == 0).astype(jnp.float32).reshape(B, 1, S)

    layer_keys = jax.random.split(k_layers, num_layers)
    layer_params = [init_layer_params(k, d_model, dff) for k in layer_keys]
    packed = pack_layer_params(layer_params)                # bf16 matmul weights

    fwd = jax.jit(functools.partial(encoder_forward,
                                    d_model=d_model, num_heads=num_heads,
                                    num_layers=num_layers))
    out = fwd(tokens, mask, word_emb, pos_enc, packed)
    out = jax.block_until_ready(out)

    ref = ref_encoder(tokens, mask, word_emb, pos_enc, layer_params,
                      d_model, num_heads)
    ref = jax.block_until_ready(ref)

    assert out.shape == (B, S, d_model)
    assert bool(jnp.all(jnp.isfinite(out)))
    # bf16 matmul operands (f32 accumulation) -> slightly looser tolerance
    np.testing.assert_allclose(np.asarray(out), np.asarray(ref),
                               rtol=2e-2, atol=2e-2)
    print("KERNEL_OK")
</pallas_src>

<mosaic_0001>
module attributes {stable_mosaic.version = 11 : i64} {
  func.func @_encoder_layer_kernel(%arg0: i32, %arg1: i32, %arg2: memref<1x8x32xf32, #tpu.memory_space<vmem>>, %arg3: memref<8x32xf32, #tpu.memory_space<vmem>>, %arg4: memref<1x1x8xf32, #tpu.memory_space<vmem>>, %arg5: memref<1x32x96xbf16, #tpu.memory_space<vmem>>, %arg6: memref<1x1x96xf32, #tpu.memory_space<vmem>>, %arg7: memref<1x32x32xbf16, #tpu.memory_space<vmem>>, %arg8: memref<1x1x32xf32, #tpu.memory_space<vmem>>, %arg9: memref<1x32x64xbf16, #tpu.memory_space<vmem>>, %arg10: memref<1x1x64xf32, #tpu.memory_space<vmem>>, %arg11: memref<1x64x32xbf16, #tpu.memory_space<vmem>>, %arg12: memref<1x1x32xf32, #tpu.memory_space<vmem>>, %arg13: memref<1x1x32xf32, #tpu.memory_space<vmem>>, %arg14: memref<1x1x32xf32, #tpu.memory_space<vmem>>, %arg15: memref<1x1x32xf32, #tpu.memory_space<vmem>>, %arg16: memref<1x1x32xf32, #tpu.memory_space<vmem>>, %arg17: memref<1x8x32xf32, #tpu.memory_space<vmem>>, %arg18: memref<8x32xf32, #tpu.memory_space<vmem>>) attributes {dimension_semantics = [#tpu.dimension_semantics<parallel>, #tpu.dimension_semantics<arbitrary>], iteration_bounds = array<i64: 2, 2>, scalar_prefetch = 0 : i64, scratch_operands = 1 : i64, tpu.core_type = #tpu.core_type<tc>, window_params = [{transform_indices = @transform_0, window_bounds = array<i64: 1, 8, 32>}, {pipeline_mode = #tpu.pipeline_mode<synchronous>, transform_indices = @transform_1, window_bounds = array<i64: 8, 32>}, {transform_indices = @transform_2, window_bounds = array<i64: 1, 1, 8>}, {transform_indices = @transform_3, window_bounds = array<i64: 1, 32, 96>}, {transform_indices = @transform_4, window_bounds = array<i64: 1, 1, 96>}, {transform_indices = @transform_5, window_bounds = array<i64: 1, 32, 32>}, {transform_indices = @transform_6, window_bounds = array<i64: 1, 1, 32>}, {transform_indices = @transform_7, window_bounds = array<i64: 1, 32, 64>}, {transform_indices = @transform_8, window_bounds = array<i64: 1, 1, 64>}, {transform_indices = @transform_9, window_bounds = array<i64: 1, 64, 32>}, {transform_indices = @transform_10, window_bounds = array<i64: 1, 1, 32>}, {transform_indices = @transform_11, window_bounds = array<i64: 1, 1, 32>}, {transform_indices = @transform_12, window_bounds = array<i64: 1, 1, 32>}, {transform_indices = @transform_13, window_bounds = array<i64: 1, 1, 32>}, {transform_indices = @transform_14, window_bounds = array<i64: 1, 1, 32>}, {transform_indices = @transform_15, window_bounds = array<i64: 1, 8, 32>}]} {
    %c0_i32 = arith.constant 0 : i32
    %0 = arith.cmpi eq, %arg1, %c0_i32 : i32
    %1 = arith.extui %0 : i1 to i32
    %c0_i32_0 = arith.constant 0 : i32
    %2 = arith.cmpi ne, %1, %c0_i32_0 : i32
    scf.if %2 {
      %c0_63 = arith.constant 0 : index
      %c0_64 = arith.constant 0 : index
      %c0_65 = arith.constant 0 : index
      %120 = vector.load %arg2[%c0_63, %c0_64, %c0_65] : memref<1x8x32xf32, #tpu.memory_space<vmem>>, vector<1x8x32xf32>
      %121 = vector.shape_cast %120 : vector<1x8x32xf32> to vector<8x32xf32>
      %cst_66 = arith.constant 5.65685415 : f32
      %122 = vector.broadcast %cst_66 : f32 to vector<8x32xf32>
      %123 = arith.mulf %121, %122 : vector<8x32xf32>
      %c0_67 = arith.constant 0 : index
      %c0_68 = arith.constant 0 : index
      %124 = vector.load %arg3[%c0_67, %c0_68] : memref<8x32xf32, #tpu.memory_space<vmem>>, vector<8x32xf32>
      %125 = arith.addf %123, %124 : vector<8x32xf32>
      %c0_69 = arith.constant 0 : index
      %c0_70 = arith.constant 0 : index
      %126 = vector.load %arg18[%c0_69, %c0_70] : memref<8x32xf32, #tpu.memory_space<vmem>>, vector<8x32xf32>
      tpu.vector_store %arg18[%c0_69, %c0_70], %125 {strides = array<i32>} : memref<8x32xf32, #tpu.memory_space<vmem>>, vector<8x32xf32>,
    } else {
    }
    %c0 = arith.constant 0 : index
    %c0_1 = arith.constant 0 : index
    %3 = vector.load %arg18[%c0, %c0_1] : memref<8x32xf32, #tpu.memory_space<vmem>>, vector<8x32xf32>
    %c0_2 = arith.constant 0 : index
    %c0_3 = arith.constant 0 : index
    %c0_4 = arith.constant 0 : index
    %4 = vector.load %arg4[%c0_2, %c0_3, %c0_4] : memref<1x1x8xf32, #tpu.memory_space<vmem>>, vector<1x1x8xf32>
    %5 = vector.shape_cast %4 : vector<1x1x8xf32> to vector<1x8xf32>
    %6 = arith.truncf %3 : vector<8x32xf32> to vector<8x32xbf16>
    %c0_5 = arith.constant 0 : index
    %c0_6 = arith.constant 0 : index
    %c0_7 = arith.constant 0 : index
    %7 = vector.load %arg5[%c0_5, %c0_6, %c0_7] : memref<1x32x96xbf16, #tpu.memory_space<vmem>>, vector<1x32x96xbf16>
    %8 = vector.shape_cast %7 : vector<1x32x96xbf16> to vector<32x96xbf16>
    %cst = arith.constant dense<0.000000e+00> : vector<8x96xf32>
    %9 = tpu.matmul %6, %8, %cst {dimension_numbers = #tpu.dot_dimension_numbers<[1], [0], [0], [1], [0, 0, 1, 1], [], []>} : vector<8x32xbf16>, vector<32x96xbf16>, vector<8x96xf32> -> vector<8x96xf32>
    %c0_8 = arith.constant 0 : index
    %c0_9 = arith.constant 0 : index
    %c0_10 = arith.constant 0 : index
    %10 = vector.load %arg6[%c0_8, %c0_9, %c0_10] : memref<1x1x96xf32, #tpu.memory_space<vmem>>, vector<1x1x96xf32>
    %11 = vector.shape_cast %10 : vector<1x1x96xf32> to vector<1x96xf32>
    %12 = vector.broadcast %11 : vector<1x96xf32> to vector<8x96xf32>
    %13 = arith.addf %9, %12 : vector<8x96xf32>
    %14 = vector.shape_cast %13 : vector<8x96xf32> to vector<8x12x8xf32>
    %15 = tpu.transpose %14, [1, 0, 2] : vector<8x12x8xf32> -> vector<12x8x8xf32>
    %16 = arith.truncf %15 : vector<12x8x8xf32> to vector<12x8x8xbf16>
    %17 = vector.extract_strided_slice %16 {offsets = [0, 0, 0], sizes = [4, 8, 8], strides = [1, 1, 1]} : vector<12x8x8xbf16> to vector<4x8x8xbf16>
    %18 = vector.extract_strided_slice %16 {offsets = [4, 0, 0], sizes = [4, 8, 8], strides = [1, 1, 1]} : vector<12x8x8xbf16> to vector<4x8x8xbf16>
    %19 = vector.extract_strided_slice %16 {offsets = [8, 0, 0], sizes = [4, 8, 8], strides = [1, 1, 1]} : vector<12x8x8xbf16> to vector<4x8x8xbf16>
    "tpu.trace_start"() <{level = 10 : i32, message = "hqd,hkd->hqk"}> : () -> ()
    %cst_11 = arith.constant dense<0.000000e+00> : vector<4x8x8xf32>
    %20 = tpu.matmul %17, %18, %cst_11 {dimension_numbers = #tpu.dot_dimension_numbers<[2], [2], [1], [1], [0, 0, 0, 1, 1, 1], [0], [0]>} : vector<4x8x8xbf16>, vector<4x8x8xbf16>, vector<4x8x8xf32> -> vector<4x8x8xf32>
    "tpu.trace_stop"() : () -> ()
    %cst_12 = arith.constant 0.353553385 : f32
    %21 = vector.broadcast %cst_12 : f32 to vector<4x8x8xf32>
    %22 = arith.mulf %20, %21 : vector<4x8x8xf32>
    %23 = vector.shape_cast %5 : vector<1x8xf32> to vector<1x1x8xf32>
    %24 = vector.broadcast %23 : vector<1x1x8xf32> to vector<4x8x8xf32>
    %25 = arith.addf %22, %24 : vector<4x8x8xf32>
    %cst_13 = arith.constant dense<0xFF800000> : vector<4x8xf32>
    %26 = vector.multi_reduction <maximumf>, %25, %cst_13 [2] : vector<4x8x8xf32> to vector<4x8xf32>
    %27 = vector.shape_cast %26 : vector<4x8xf32> to vector<4x8x1xf32>
    %28 = vector.broadcast %27 : vector<4x8x1xf32> to vector<4x8x8xf32>
    %29 = arith.subf %25, %28 : vector<4x8x8xf32>
    %30 = math.exp %29 : vector<4x8x8xf32>
    %cst_14 = arith.constant dense<0.000000e+00> : vector<4x8xf32>
    %31 = vector.multi_reduction <add>, %30, %cst_14 [2] : vector<4x8x8xf32> to vector<4x8xf32>
    %32 = vector.shape_cast %31 : vector<4x8xf32> to vector<4x8x1xf32>
    %33 = tpu.reciprocal %32 {approx = true} : vector<4x8x1xf32> -> vector<4x8x1xf32>
    %34 = vector.broadcast %33 : vector<4x8x1xf32> to vector<4x8x8xf32>
    %35 = arith.mulf %30, %34 : vector<4x8x8xf32>
    %36 = arith.truncf %35 : vector<4x8x8xf32> to vector<4x8x8xbf16>
    "tpu.trace_start"() <{level = 10 : i32, message = "hqk,hkd->hqd"}> : () -> ()
    %cst_15 = arith.constant dense<0.000000e+00> : vector<4x8x8xf32>
    %37 = tpu.matmul %36, %19, %cst_15 {dimension_numbers = #tpu.dot_dimension_numbers<[2], [1], [1], [2], [0, 0, 0, 1, 1, 2], [0], [0]>} : vector<4x8x8xbf16>, vector<4x8x8xbf16>, vector<4x8x8xf32> -> vector<4x8x8xf32>
    "tpu.trace_stop"() : () -> ()
    %38 = tpu.transpose %37, [1, 0, 2] : vector<4x8x8xf32> -> vector<8x4x8xf32>
    %39 = vector.shape_cast %38 : vector<8x4x8xf32> to vector<8x32xf32>
    %40 = arith.truncf %39 : vector<8x32xf32> to vector<8x32xbf16>
    %c0_16 = arith.constant 0 : index
    %c0_17 = arith.constant 0 : index
    %c0_18 = arith.constant 0 : index
    %41 = vector.load %arg7[%c0_16, %c0_17, %c0_18] : memref<1x32x32xbf16, #tpu.memory_space<vmem>>, vector<1x32x32xbf16>
    %42 = vector.shape_cast %41 : vector<1x32x32xbf16> to vector<32x32xbf16>
    %cst_19 = arith.constant dense<0.000000e+00> : vector<8x32xf32>
    %43 = tpu.matmul %40, %42, %cst_19 {dimension_numbers = #tpu.dot_dimension_numbers<[1], [0], [0], [1], [0, 0, 1, 1], [], []>} : vector<8x32xbf16>, vector<32x32xbf16>, vector<8x32xf32> -> vector<8x32xf32>
    %c0_20 = arith.constant 0 : index
    %c0_21 = arith.constant 0 : index
    %c0_22 = arith.constant 0 : index
    %44 = vector.load %arg8[%c0_20, %c0_21, %c0_22] : memref<1x1x32xf32, #tpu.memory_space<vmem>>, vector<1x1x32xf32>
    %45 = vector.shape_cast %44 : vector<1x1x32xf32> to vector<1x32xf32>
    %46 = vector.broadcast %45 : vector<1x32xf32> to vector<8x32xf32>
    %47 = arith.addf %43, %46 : vector<8x32xf32>
    %48 = arith.addf %3, %47 : vector<8x32xf32>
    %c0_23 = arith.constant 0 : index
    %c0_24 = arith.constant 0 : index
    %c0_25 = arith.constant 0 : index
    %49 = vector.load %arg13[%c0_23, %c0_24, %c0_25] : memref<1x1x32xf32, #tpu.memory_space<vmem>>, vector<1x1x32xf32>
    %50 = vector.shape_cast %49 : vector<1x1x32xf32> to vector<1x32xf32>
    %c0_26 = arith.constant 0 : index
    %c0_27 = arith.constant 0 : index
    %c0_28 = arith.constant 0 : index
    %51 = vector.load %arg14[%c0_26, %c0_27, %c0_28] : memref<1x1x32xf32, #tpu.memory_space<vmem>>, vector<1x1x32xf32>
    %52 = vector.shape_cast %51 : vector<1x1x32xf32> to vector<1x32xf32>
    %cst_29 = arith.constant dense<0.000000e+00> : vector<8xf32>
    %53 = vector.multi_reduction <add>, %48, %cst_29 [1] : vector<8x32xf32> to vector<8xf32>
    %54 = vector.shape_cast %53 : vector<8xf32> to vector<8x1xf32>
    %cst_30 = arith.constant 3.200000e+01 : f32
    %55 = vector.broadcast %cst_30 : f32 to vector<8x1xf32>
    %56 = arith.divf %54, %55 : vector<8x1xf32>
    %57 = vector.broadcast %56 : vector<8x1xf32> to vector<8x32xf32>
    %58 = arith.subf %48, %57 : vector<8x32xf32>
    %59 = arith.mulf %58, %58 : vector<8x32xf32>
    %cst_31 = arith.constant dense<0.000000e+00> : vector<8xf32>
    %60 = vector.multi_reduction <add>, %59, %cst_31 [1] : vector<8x32xf32> to vector<8xf32>
    %61 = vector.shape_cast %60 : vector<8xf32> to vector<8x1xf32>
    %cst_32 = arith.constant 3.200000e+01 : f32
    %62 = vector.broadcast %cst_32 : f32 to vector<8x1xf32>
    %63 = arith.divf %61, %62 : vector<8x1xf32>
    %cst_33 = arith.constant 9.99999997E-7 : f32
    %64 = vector.broadcast %cst_33 : f32 to vector<8x1xf32>
    %65 = arith.addf %63, %64 : vector<8x1xf32>
    %66 = math.rsqrt %65 : vector<8x1xf32>
    %67 = vector.broadcast %66 : vector<8x1xf32> to vector<8x32xf32>
    %68 = arith.mulf %58, %67 : vector<8x32xf32>
    %69 = vector.broadcast %50 : vector<1x32xf32> to vector<8x32xf32>
    %70 = arith.mulf %68, %69 : vector<8x32xf32>
    %71 = vector.broadcast %52 : vector<1x32xf32> to vector<8x32xf32>
    %72 = arith.addf %70, %71 : vector<8x32xf32>
    %73 = arith.truncf %72 : vector<8x32xf32> to vector<8x32xbf16>
    %c0_34 = arith.constant 0 : index
    %c0_35 = arith.constant 0 : index
    %c0_36 = arith.constant 0 : index
    %74 = vector.load %arg9[%c0_34, %c0_35, %c0_36] : memref<1x32x64xbf16, #tpu.memory_space<vmem>>, vector<1x32x64xbf16>
    %75 = vector.shape_cast %74 : vector<1x32x64xbf16> to vector<32x64xbf16>
    %cst_37 = arith.constant dense<0.000000e+00> : vector<8x64xf32>
    %76 = tpu.matmul %73, %75, %cst_37 {dimension_numbers = #tpu.dot_dimension_numbers<[1], [0], [0], [1], [0, 0, 1, 1], [], []>} : vector<8x32xbf16>, vector<32x64xbf16>, vector<8x64xf32> -> vector<8x64xf32>
    %c0_38 = arith.constant 0 : index
    %c0_39 = arith.constant 0 : index
    %c0_40 = arith.constant 0 : index
    %77 = vector.load %arg10[%c0_38, %c0_39, %c0_40] : memref<1x1x64xf32, #tpu.memory_space<vmem>>, vector<1x1x64xf32>
    %78 = vector.shape_cast %77 : vector<1x1x64xf32> to vector<1x64xf32>
    %79 = vector.broadcast %78 : vector<1x64xf32> to vector<8x64xf32>
    %80 = arith.addf %76, %79 : vector<8x64xf32>
    %cst_41 = arith.constant 0.000000e+00 : f32
    %81 = vector.broadcast %cst_41 : f32 to vector<8x64xf32>
    %82 = arith.maximumf %80, %81 : vector<8x64xf32>
    %83 = arith.truncf %82 : vector<8x64xf32> to vector<8x64xbf16>
    %c0_42 = arith.constant 0 : index
    %c0_43 = arith.constant 0 : index
    %c0_44 = arith.constant 0 : index
    %84 = vector.load %arg11[%c0_42, %c0_43, %c0_44] : memref<1x64x32xbf16, #tpu.memory_space<vmem>>, vector<1x64x32xbf16>
    %85 = vector.shape_cast %84 : vector<1x64x32xbf16> to vector<64x32xbf16>
    %cst_45 = arith.constant dense<0.000000e+00> : vector<8x32xf32>
    %86 = tpu.matmul %83, %85, %cst_45 {dimension_numbers = #tpu.dot_dimension_numbers<[1], [0], [0], [1], [0, 0, 1, 1], [], []>} : vector<8x64xbf16>, vector<64x32xbf16>, vector<8x32xf32> -> vector<8x32xf32>
    %c0_46 = arith.constant 0 : index
    %c0_47 = arith.constant 0 : index
    %c0_48 = arith.constant 0 : index
    %87 = vector.load %arg12[%c0_46, %c0_47, %c0_48] : memref<1x1x32xf32, #tpu.memory_space<vmem>>, vector<1x1x32xf32>
    %88 = vector.shape_cast %87 : vector<1x1x32xf32> to vector<1x32xf32>
    %89 = vector.broadcast %88 : vector<1x32xf32> to vector<8x32xf32>
    %90 = arith.addf %86, %89 : vector<8x32xf32>
    %91 = arith.addf %72, %90 : vector<8x32xf32>
    %c0_49 = arith.constant 0 : index
    %c0_50 = arith.constant 0 : index
    %c0_51 = arith.constant 0 : index
    %92 = vector.load %arg15[%c0_49, %c0_50, %c0_51] : memref<1x1x32xf32, #tpu.memory_space<vmem>>, vector<1x1x32xf32>
    %93 = vector.shape_cast %92 : vector<1x1x32xf32> to vector<1x32xf32>
    %c0_52 = arith.constant 0 : index
    %c0_53 = arith.constant 0 : index
    %c0_54 = arith.constant 0 : index
    %94 = vector.load %arg16[%c0_52, %c0_53, %c0_54] : memref<1x1x32xf32, #tpu.memory_space<vmem>>, vector<1x1x32xf32>
    %95 = vector.shape_cast %94 : vector<1x1x32xf32> to vector<1x32xf32>
    %cst_55 = arith.constant dense<0.000000e+00> : vector<8xf32>
    %96 = vector.multi_reduction <add>, %91, %cst_55 [1] : vector<8x32xf32> to vector<8xf32>
    %97 = vector.shape_cast %96 : vector<8xf32> to vector<8x1xf32>
    %cst_56 = arith.constant 3.200000e+01 : f32
    %98 = vector.broadcast %cst_56 : f32 to vector<8x1xf32>
    %99 = arith.divf %97, %98 : vector<8x1xf32>
    %100 = vector.broadcast %99 : vector<8x1xf32> to vector<8x32xf32>
    %101 = arith.subf %91, %100 : vector<8x32xf32>
    %102 = arith.mulf %101, %101 : vector<8x32xf32>
    %cst_57 = arith.constant dense<0.000000e+00> : vector<8xf32>
    %103 = vector.multi_reduction <add>, %102, %cst_57 [1] : vector<8x32xf32> to vector<8xf32>
    %104 = vector.shape_cast %103 : vector<8xf32> to vector<8x1xf32>
    %cst_58 = arith.constant 3.200000e+01 : f32
    %105 = vector.broadcast %cst_58 : f32 to vector<8x1xf32>
    %106 = arith.divf %104, %105 : vector<8x1xf32>
    %cst_59 = arith.constant 9.99999997E-7 : f32
    %107 = vector.broadcast %cst_59 : f32 to vector<8x1xf32>
    %108 = arith.addf %106, %107 : vector<8x1xf32>
    %109 = math.rsqrt %108 : vector<8x1xf32>
    %110 = vector.broadcast %109 : vector<8x1xf32> to vector<8x32xf32>
    %111 = arith.mulf %101, %110 : vector<8x32xf32>
    %112 = vector.broadcast %93 : vector<1x32xf32> to vector<8x32xf32>
    %113 = arith.mulf %111, %112 : vector<8x32xf32>
    %114 = vector.broadcast %95 : vector<1x32xf32> to vector<8x32xf32>
    %115 = arith.addf %113, %114 : vector<8x32xf32>
    %c0_60 = arith.constant 0 : index
    %c0_61 = arith.constant 0 : index
    %116 = vector.load %arg18[%c0_60, %c0_61] : memref<8x32xf32, #tpu.memory_space<vmem>>, vector<8x32xf32>
    tpu.vector_store %arg18[%c0_60, %c0_61], %115 {strides = array<i32>} : memref<8x32xf32, #tpu.memory_space<vmem>>, vector<8x32xf32>,
    %c1_i32 = arith.constant 1 : i32
    %117 = arith.cmpi eq, %arg1, %c1_i32 : i32
    %118 = arith.extui %117 : i1 to i32
    %c0_i32_62 = arith.constant 0 : i32
    %119 = arith.cmpi ne, %118, %c0_i32_62 : i32
    scf.if %119 {
      %c0_63 = arith.constant 0 : index
      %c0_64 = arith.constant 0 : index
      %c0_65 = arith.constant 0 : index
      %120 = vector.load %arg17[%c0_63, %c0_64, %c0_65] : memref<1x8x32xf32, #tpu.memory_space<vmem>>, vector<1x8x32xf32>
      %121 = vector.shape_cast %120 : vector<1x8x32xf32> to vector<8x32xf32>
      %122 = vector.shape_cast %115 : vector<8x32xf32> to vector<1x8x32xf32>
      tpu.vector_store %arg17[%c0_63, %c0_64, %c0_65], %122 {strides = array<i32>} : memref<1x8x32xf32, #tpu.memory_space<vmem>>, vector<1x8x32xf32>,
    } else {
    }
    return
  }
  func.func @transform_0(%arg0: i32, %arg1: i32) -> (i32, i32, i32) {
    %c0_i32 = arith.constant 0 : i32
    %c0_i32_0 = arith.constant 0 : i32
    %c0_i32_1 = arith.constant 0 : i32
    return %arg0, %c0_i32, %c0_i32_0 : i32, i32, i32
  }
  func.func @transform_1(%arg0: i32, %arg1: i32) -> (i32, i32) {
    %c0_i32 = arith.constant 0 : i32
    %c0_i32_0 = arith.constant 0 : i32
    %c0_i32_1 = arith.constant 0 : i32
    return %c0_i32, %c0_i32_0 : i32, i32
  }
  func.func @transform_2(%arg0: i32, %arg1: i32) -> (i32, i32, i32) {
    %c0_i32 = arith.constant 0 : i32
    %c0_i32_0 = arith.constant 0 : i32
    %c0_i32_1 = arith.constant 0 : i32
    return %arg0, %c0_i32, %c0_i32_0 : i32, i32, i32
  }
  func.func @transform_3(%arg0: i32, %arg1: i32) -> (i32, i32, i32) {
    %c0_i32 = arith.constant 0 : i32
    %c0_i32_0 = arith.constant 0 : i32
    %c0_i32_1 = arith.constant 0 : i32
    return %arg1, %c0_i32, %c0_i32_0 : i32, i32, i32
  }
  func.func @transform_4(%arg0: i32, %arg1: i32) -> (i32, i32, i32) {
    %c0_i32 = arith.constant 0 : i32
    %c0_i32_0 = arith.constant 0 : i32
    %c0_i32_1 = arith.constant 0 : i32
    return %arg1, %c0_i32, %c0_i32_0 : i32, i32, i32
  }
  func.func @transform_5(%arg0: i32, %arg1: i32) -> (i32, i32, i32) {
    %c0_i32 = arith.constant 0 : i32
    %c0_i32_0 = arith.constant 0 : i32
    %c0_i32_1 = arith.constant 0 : i32
    return %arg1, %c0_i32, %c0_i32_0 : i32, i32, i32
  }
  func.func @transform_6(%arg0: i32, %arg1: i32) -> (i32, i32, i32) {
    %c0_i32 = arith.constant 0 : i32
    %c0_i32_0 = arith.constant 0 : i32
    %c0_i32_1 = arith.constant 0 : i32
    return %arg1, %c0_i32, %c0_i32_0 : i32, i32, i32
  }
  func.func @transform_7(%arg0: i32, %arg1: i32) -> (i32, i32, i32) {
    %c0_i32 = arith.constant 0 : i32
    %c0_i32_0 = arith.constant 0 : i32
    %c0_i32_1 = arith.constant 0 : i32
    return %arg1, %c0_i32, %c0_i32_0 : i32, i32, i32
  }
  func.func @transform_8(%arg0: i32, %arg1: i32) -> (i32, i32, i32) {
    %c0_i32 = arith.constant 0 : i32
    %c0_i32_0 = arith.constant 0 : i32
    %c0_i32_1 = arith.constant 0 : i32
    return %arg1, %c0_i32, %c0_i32_0 : i32, i32, i32
  }
  func.func @transform_9(%arg0: i32, %arg1: i32) -> (i32, i32, i32) {
    %c0_i32 = arith.constant 0 : i32
    %c0_i32_0 = arith.constant 0 : i32
    %c0_i32_1 = arith.constant 0 : i32
    return %arg1, %c0_i32, %c0_i32_0 : i32, i32, i32
  }
  func.func @transform_10(%arg0: i32, %arg1: i32) -> (i32, i32, i32) {
    %c0_i32 = arith.constant 0 : i32
    %c0_i32_0 = arith.constant 0 : i32
    %c0_i32_1 = arith.constant 0 : i32
    return %arg1, %c0_i32, %c0_i32_0 : i32, i32, i32
  }
  func.func @transform_11(%arg0: i32, %arg1: i32) -> (i32, i32, i32) {
    %c0_i32 = arith.constant 0 : i32
    %c0_i32_0 = arith.constant 0 : i32
    %c0_i32_1 = arith.constant 0 : i32
    return %arg1, %c0_i32, %c0_i32_0 : i32, i32, i32
  }
  func.func @transform_12(%arg0: i32, %arg1: i32) -> (i32, i32, i32) {
    %c0_i32 = arith.constant 0 : i32
    %c0_i32_0 = arith.constant 0 : i32
    %c0_i32_1 = arith.constant 0 : i32
    return %arg1, %c0_i32, %c0_i32_0 : i32, i32, i32
  }
  func.func @transform_13(%arg0: i32, %arg1: i32) -> (i32, i32, i32) {
    %c0_i32 = arith.constant 0 : i32
    %c0_i32_0 = arith.constant 0 : i32
    %c0_i32_1 = arith.constant 0 : i32
    return %arg1, %c0_i32, %c0_i32_0 : i32, i32, i32
  }
  func.func @transform_14(%arg0: i32, %arg1: i32) -> (i32, i32, i32) {
    %c0_i32 = arith.constant 0 : i32
    %c0_i32_0 = arith.constant 0 : i32
    %c0_i32_1 = arith.constant 0 : i32
    return %arg1, %c0_i32, %c0_i32_0 : i32, i32, i32
  }
  func.func @transform_15(%arg0: i32, %arg1: i32) -> (i32, i32, i32) {
    %c0_i32 = arith.constant 0 : i32
    %c0_i32_0 = arith.constant 0 : i32
    %c0_i32_1 = arith.constant 0 : i32
    return %arg0, %c0_i32, %c0_i32_0 : i32, i32, i32
  }
}

</mosaic_0001>

<llo_original>
// kernel: encoder_forward.1
$region0: #{encoder_forward.1}
  #allocation0 [shape = 'u32[]', space=smem, size = 0x4, offset = 0x4, fixed_abs, tag = 'smem constant byte address 0x4 - core index']
  #allocation1 [shape = 'u32[144,128]{1,0:T(1,128)}', space=vmem, size = 0x12000, scoped, tag = 'internal scratch']
  #allocation2 [shape = 'f32[8,32]{1,0:T(8,128)}', space=vmem, size = 0x1000, scoped, tag = 'scratch operand']
  %s0 = inlined_call_operand.vmem [shape: f32[2,8,32], index: 0, kind: input, shape index: {}]
  %s1 = inlined_call_operand.vmem [shape: f32[8,32], index: 1, kind: input, shape index: {}]
  %s2 = inlined_call_operand.vmem [shape: f32[2,1,8], index: 2, kind: input, shape index: {}]
  %s3 = inlined_call_operand.vmem [shape: bf16[2,32,96], index: 3, kind: input, shape index: {}]
  %s4 = inlined_call_operand.vmem [shape: f32[2,1,96], index: 4, kind: input, shape index: {}]
  %s5 = inlined_call_operand.vmem [shape: bf16[2,32,32], index: 5, kind: input, shape index: {}]
  %s6 = inlined_call_operand.vmem [shape: f32[2,1,32], index: 6, kind: input, shape index: {}]
  %s7 = inlined_call_operand.vmem [shape: bf16[2,32,64], index: 7, kind: input, shape index: {}]
  %s8 = inlined_call_operand.vmem [shape: f32[2,1,64], index: 8, kind: input, shape index: {}]
  %s9 = inlined_call_operand.vmem [shape: bf16[2,64,32], index: 9, kind: input, shape index: {}]
  %s10 = inlined_call_operand.vmem [shape: f32[2,1,32], index: 10, kind: input, shape index: {}]
  %s11 = inlined_call_operand.vmem [shape: f32[2,1,32], index: 11, kind: input, shape index: {}]
  %s12 = inlined_call_operand.vmem [shape: f32[2,1,32], index: 12, kind: input, shape index: {}]
  %s13 = inlined_call_operand.vmem [shape: f32[2,1,32], index: 13, kind: input, shape index: {}]
  %s14 = inlined_call_operand.vmem [shape: f32[2,1,32], index: 14, kind: input, shape index: {}]
  %s15 = inlined_call_operand.hbm [shape: f32[2,8,32], index: 15, kind: output, shape index: {}]
  %s16 = sld [smem:[#allocation0]]
  $region101: #{encoder_forward.1} parent=0
    _
  %s18 = ssub.s32 1, %s16
  %s19 = scalar_select 0, %s18, %s16
  $region1: #{encoder_forward.1} parent=0
    #allocation3 [shape = 'u8[8192]{0}', space=vmem, size = 0x2000, scoped, tag = 'output window, operand 0']
    #allocation4 [shape = 's32[2]{0}', space=sflag, size = 0x8, scoped, tag = 'scoped memory for encoder_forward.1']
    %20 = vsyncpa [#allocation4], 0
    %s21 = scalar_lea.sflag [#allocation4], 1
    %22 = vsyncpa %s21, 0
    loop: start=0, step=1, limit=6
    $region2: #{encoder_forward.1} parent=1 // loop_pre_header
      _
    $region3: #{encoder_forward.1} parent=1 // loop_header
      %s24 = sphi 0, %s28
      %p25 = scmp.ge.s32.totalorder %s24, 6
      %s31 = sphi 0, %s43
      %s32 = sphi 0, %s39
      %s33 = sphi 0, %s31
      %s34 = sphi 0, %s32
      %s35 = sphi 0, %s33
      %s36 = sphi 0, %s34
      %s46 = sphi 0, %s48
      %s49 = sphi 0, %s46
      %s50 = sphi 0, %s49
      %s66 = sphi 0, %s50
      %s70 = sphi 0, %s70
      %s72 = sphi 0, %s70
      %s73 = sphi 0, %s72
      %s87 = sphi 0, %s73
      %s93 = sphi 0, %s95
      %s96 = sphi 0, %s93
      %s97 = sphi 0, %s96
      %s113 = sphi 0, %s97
      %s119 = sphi 0, %s121
      %s122 = sphi 0, %s119
      %s123 = sphi 0, %s122
      %s139 = sphi 0, %s123
      %s145 = sphi 0, %s147
      %s148 = sphi 0, %s145
      %s149 = sphi 0, %s148
      %s165 = sphi 0, %s149
      %s171 = sphi 0, %s173
      %s174 = sphi 0, %s171
      %s175 = sphi 0, %s174
      %s191 = sphi 0, %s175
      %s197 = sphi 0, %s199
      %s200 = sphi 0, %s197
      %s201 = sphi 0, %s200
      %s217 = sphi 0, %s201
      %s223 = sphi 0, %s225
      %s226 = sphi 0, %s223
      %s227 = sphi 0, %s226
      %s243 = sphi 0, %s227
      %s249 = sphi 0, %s251
      %s252 = sphi 0, %s249
      %s253 = sphi 0, %s252
      %s269 = sphi 0, %s253
      %s275 = sphi 0, %s277
      %s278 = sphi 0, %s275
      %s279 = sphi 0, %s278
      %s295 = sphi 0, %s279
      %s301 = sphi 0, %s303
      %s304 = sphi 0, %s301
      %s305 = sphi 0, %s304
      %s321 = sphi 0, %s305
      %s327 = sphi 0, %s329
      %s330 = sphi 0, %s327
      %s331 = sphi 0, %s330
      %s347 = sphi 0, %s331
      %s353 = sphi 0, %s355
      %s356 = sphi 0, %s353
      %s357 = sphi 0, %s356
      %s373 = sphi 0, %s357
      %s379 = sphi 0, %s381
      %s382 = sphi 0, %s379
      %s383 = sphi 0, %s382
      %s399 = sphi 0, %s383
      %s405 = sphi 0, %s407
      %s408 = sphi 0, %s405
      %s409 = sphi 0, %s408
      %s425 = sphi 0, %s409
      %s431 = sphi 0, %s433
      %s434 = sphi 0, %s431
      %s435 = sphi 0, %s434
      %s451 = sphi 0, %s435
    $region4: #{encoder_forward.1} parent=1 // loop_header_branch
      %27 = sbr.rel (%p25) target = $region8
    $region5: #{encoder_forward.1} parent=1 // loop_body
      %s29 = ssub.s32 %s24, 1
      %s30 = ssub.s32 %s24, 2
      %s37 = sadd.s32 1, %s32
      %p38 = scmp.ge.s32.totalorder %s37, 2
      %s39 = scalar_select %p38, 0, %s37
      %s40 = sadd.s32 1, %s31
      %s41 = scalar_select %p38, %s40, %s31
      %p42 = scmp.ge.s32.totalorder %s41, 2
      %s43 = scalar_select %p42, 0, %s41
      %s44 = ssub.s32 %s31, %s43
      %p45 = scmp.eq.s32.totalorder %s44, 0
      %s47 = sadd.s32 %s46, 1
      %s48 = scalar_select %p45, %s46, %s47
      %p51 = pneg %p45
      %p52 = scmp.eq.s32.totalorder %s24, 3
      %p53 = por %p51, %p52
      %p54 = scmp.ne.s32.totalorder %s46, %s49
      %p55 = scmp.eq.s32.totalorder %s24, 0
      %p56 = por %p54, %p55
      %p57 = scmp.ne.s32.totalorder %s46, %s49
      %p58 = scmp.eq.s32.totalorder %s29, 3
      %p59 = por %p57, %p58
      %p60 = scmp.ne.s32.totalorder %s49, %s50
      %p61 = scmp.eq.s32.totalorder %s29, 0
      %p62 = por %p60, %p61
      %p63 = scmp.ne.s32.totalorder %s49, %s50
      %p64 = scmp.eq.s32.totalorder %s30, 3
      %p65 = por %p63, %p64
      %p67 = scmp.ne.s32.totalorder %s50, %s66
      %p68 = scmp.eq.s32.totalorder %s30, 0
      %p69 = por %p67, %p68
      %s71 = sadd.s32 %s70, 1
      %p74 = scmp.eq.s32.totalorder %s24, 3
      %p75 = scmp.ne.s32.totalorder %s70, %s72
      %p76 = scmp.eq.s32.totalorder %s24, 0
      %p77 = por %p75, %p76
      %p78 = scmp.ne.s32.totalorder %s70, %s72
      %p79 = scmp.eq.s32.totalorder %s29, 3
      %p80 = por %p78, %p79
      %p81 = scmp.ne.s32.totalorder %s72, %s73
      %p82 = scmp.eq.s32.totalorder %s29, 0
      %p83 = por %p81, %p82
      %p84 = scmp.ne.s32.totalorder %s72, %s73
      %p85 = scmp.eq.s32.totalorder %s30, 3
      %p86 = por %p84, %p85
      %p88 = scmp.ne.s32.totalorder %s73, %s87
      %p89 = scmp.eq.s32.totalorder %s30, 0
      %p90 = por %p88, %p89
      %s91 = ssub.s32 %s31, %s43
      %p92 = scmp.eq.s32.totalorder %s91, 0
      %s94 = sadd.s32 %s93, 1
      %s95 = scalar_select %p92, %s93, %s94
      %p98 = pneg %p92
      %p99 = scmp.eq.s32.totalorder %s24, 3
      %p100 = por %p98, %p99
      %p101 = scmp.ne.s32.totalorder %s93, %s96
      %p102 = scmp.eq.s32.totalorder %s24, 0
      %p103 = por %p101, %p102
      %p104 = scmp.ne.s32.totalorder %s93, %s96
      %p105 = scmp.eq.s32.totalorder %s29, 3
      %p106 = por %p104, %p105
      %p107 = scmp.ne.s32.totalorder %s96, %s97
      %p108 = scmp.eq.s32.totalorder %s29, 0
      %p109 = por %p107, %p108
      %p110 = scmp.ne.s32.totalorder %s96, %s97
      %p111 = scmp.eq.s32.totalorder %s30, 3
      %p112 = por %p110, %p111
      %p114 = scmp.ne.s32.totalorder %s97, %s113
      %p115 = scmp.eq.s32.totalorder %s30, 0
      %p116 = por %p114, %p115
      %s117 = ssub.s32 %s32, %s39
      %p118 = scmp.eq.s32.totalorder %s117, 0
      %s120 = sadd.s32 %s119, 1
      %s121 = scalar_select %p118, %s119, %s120
      %p124 = pneg %p118
      %p125 = scmp.eq.s32.totalorder %s24, 3
      %p126 = por %p124, %p125
      %p127 = scmp.ne.s32.totalorder %s119, %s122
      %p128 = scmp.eq.s32.totalorder %s24, 0
      %p129 = por %p127, %p128
      %p130 = scmp.ne.s32.totalorder %s119, %s122
      %p131 = scmp.eq.s32.totalorder %s29, 3
      %p132 = por %p130, %p131
      %p133 = scmp.ne.s32.totalorder %s122, %s123
      %p134 = scmp.eq.s32.totalorder %s29, 0
      %p135 = por %p133, %p134
      %p136 = scmp.ne.s32.totalorder %s122, %s123
      %p137 = scmp.eq.s32.totalorder %s30, 3
      %p138 = por %p136, %p137
      %p140 = scmp.ne.s32.totalorder %s123, %s139
      %p141 = scmp.eq.s32.totalorder %s30, 0
      %p142 = por %p140, %p141
      %s143 = ssub.s32 %s32, %s39
      %p144 = scmp.eq.s32.totalorder %s143, 0
      %s146 = sadd.s32 %s145, 1
      %s147 = scalar_select %p144, %s145, %s146
      %p150 = pneg %p144
      %p151 = scmp.eq.s32.totalorder %s24, 3
      %p152 = por %p150, %p151
      %p153 = scmp.ne.s32.totalorder %s145, %s148
      %p154 = scmp.eq.s32.totalorder %s24, 0
      %p155 = por %p153, %p154
      %p156 = scmp.ne.s32.totalorder %s145, %s148
      %p157 = scmp.eq.s32.totalorder %s29, 3
      %p158 = por %p156, %p157
      %p159 = scmp.ne.s32.totalorder %s148, %s149
      %p160 = scmp.eq.s32.totalorder %s29, 0
      %p161 = por %p159, %p160
      %p162 = scmp.ne.s32.totalorder %s148, %s149
      %p163 = scmp.eq.s32.totalorder %s30, 3
      %p164 = por %p162, %p163
      %p166 = scmp.ne.s32.totalorder %s149, %s165
      %p167 = scmp.eq.s32.totalorder %s30, 0
      %p168 = por %p166, %p167
      %s169 = ssub.s32 %s32, %s39
      %p170 = scmp.eq.s32.totalorder %s169, 0
      %s172 = sadd.s32 %s171, 1
      %s173 = scalar_select %p170, %s171, %s172
      %p176 = pneg %p170
      %p177 = scmp.eq.s32.totalorder %s24, 3
      %p178 = por %p176, %p177
      %p179 = scmp.ne.s32.totalorder %s171, %s174
      %p180 = scmp.eq.s32.totalorder %s24, 0
      %p181 = por %p179, %p180
      %p182 = scmp.ne.s32.totalorder %s171, %s174
      %p183 = scmp.eq.s32.totalorder %s29, 3
      %p184 = por %p182, %p183
      %p185 = scmp.ne.s32.totalorder %s174, %s175
      %p186 = scmp.eq.s32.totalorder %s29, 0
      %p187 = por %p185, %p186
      %p188 = scmp.ne.s32.totalorder %s174, %s175
      %p189 = scmp.eq.s32.totalorder %s30, 3
      %p190 = por %p188, %p189
      %p192 = scmp.ne.s32.totalorder %s175, %s191
      %p193 = scmp.eq.s32.totalorder %s30, 0
      %p194 = por %p192, %p193
      %s195 = ssub.s32 %s32, %s39
      %p196 = scmp.eq.s32.totalorder %s195, 0
      %s198 = sadd.s32 %s197, 1
      %s199 = scalar_select %p196, %s197, %s198
      %p202 = pneg %p196
      %p203 = scmp.eq.s32.totalorder %s24, 3
      %p204 = por %p202, %p203
      %p205 = scmp.ne.s32.totalorder %s197, %s200
      %p206 = scmp.eq.s32.totalorder %s24, 0
      %p207 = por %p205, %p206
      %p208 = scmp.ne.s32.totalorder %s197, %s200
      %p209 = scmp.eq.s32.totalorder %s29, 3
      %p210 = por %p208, %p209
      %p211 = scmp.ne.s32.totalorder %s200, %s201
      %p212 = scmp.eq.s32.totalorder %s29, 0
      %p213 = por %p211, %p212
      %p214 = scmp.ne.s32.totalorder %s200, %s201
      %p215 = scmp.eq.s32.totalorder %s30, 3
      %p216 = por %p214, %p215
      %p218 = scmp.ne.s32.totalorder %s201, %s217
      %p219 = scmp.eq.s32.totalorder %s30, 0
      %p220 = por %p218, %p219
      %s221 = ssub.s32 %s32, %s39
      %p222 = scmp.eq.s32.totalorder %s221, 0
      %s224 = sadd.s32 %s223, 1
      %s225 = scalar_select %p222, %s223, %s224
      %p228 = pneg %p222
      %p229 = scmp.eq.s32.totalorder %s24, 3
      %p230 = por %p228, %p229
      %p231 = scmp.ne.s32.totalorder %s223, %s226
      %p232 = scmp.eq.s32.totalorder %s24, 0
      %p233 = por %p231, %p232
      %p234 = scmp.ne.s32.totalorder %s223, %s226
      %p235 = scmp.eq.s32.totalorder %s29, 3
      %p236 = por %p234, %p235
      %p237 = scmp.ne.s32.totalorder %s226, %s227
      %p238 = scmp.eq.s32.totalorder %s29, 0
      %p239 = por %p237, %p238
      %p240 = scmp.ne.s32.totalorder %s226, %s227
      %p241 = scmp.eq.s32.totalorder %s30, 3
      %p242 = por %p240, %p241
      %p244 = scmp.ne.s32.totalorder %s227, %s243
      %p245 = scmp.eq.s32.totalorder %s30, 0
      %p246 = por %p244, %p245
      %s247 = ssub.s32 %s32, %s39
      %p248 = scmp.eq.s32.totalorder %s247, 0
      %s250 = sadd.s32 %s249, 1
      %s251 = scalar_select %p248, %s249, %s250
      %p254 = pneg %p248
      %p255 = scmp.eq.s32.totalorder %s24, 3
      %p256 = por %p254, %p255
      %p257 = scmp.ne.s32.totalorder %s249, %s252
      %p258 = scmp.eq.s32.totalorder %s24, 0
      %p259 = por %p257, %p258
      %p260 = scmp.ne.s32.totalorder %s249, %s252
      %p261 = scmp.eq.s32.totalorder %s29, 3
      %p262 = por %p260, %p261
      %p263 = scmp.ne.s32.totalorder %s252, %s253
      %p264 = scmp.eq.s32.totalorder %s29, 0
      %p265 = por %p263, %p264
      %p266 = scmp.ne.s32.totalorder %s252, %s253
      %p267 = scmp.eq.s32.totalorder %s30, 3
      %p268 = por %p266, %p267
      %p270 = scmp.ne.s32.totalorder %s253, %s269
      %p271 = scmp.eq.s32.totalorder %s30, 0
      %p272 = por %p270, %p271
      %s273 = ssub.s32 %s32, %s39
      %p274 = scmp.eq.s32.totalorder %s273, 0
      %s276 = sadd.s32 %s275, 1
      %s277 = scalar_select %p274, %s275, %s276
      %p280 = pneg %p274
      %p281 = scmp.eq.s32.totalorder %s24, 3
      %p282 = por %p280, %p281
      %p283 = scmp.ne.s32.totalorder %s275, %s278
      %p284 = scmp.eq.s32.totalorder %s24, 0
      %p285 = por %p283, %p284
      %p286 = scmp.ne.s32.totalorder %s275, %s278
      %p287 = scmp.eq.s32.totalorder %s29, 3
      %p288 = por %p286, %p287
      %p289 = scmp.ne.s32.totalorder %s278, %s279
      %p290 = scmp.eq.s32.totalorder %s29, 0
      %p291 = por %p289, %p290
      %p292 = scmp.ne.s32.totalorder %s278, %s279
      %p293 = scmp.eq.s32.totalorder %s30, 3
      %p294 = por %p292, %p293
      %p296 = scmp.ne.s32.totalorder %s279, %s295
      %p297 = scmp.eq.s32.totalorder %s30, 0
      %p298 = por %p296, %p297
      %s299 = ssub.s32 %s32, %s39
      %p300 = scmp.eq.s32.totalorder %s299, 0
      %s302 = sadd.s32 %s301, 1
      %s303 = scalar_select %p300, %s301, %s302
      %p306 = pneg %p300
      %p307 = scmp.eq.s32.totalorder %s24, 3
      %p308 = por %p306, %p307
      %p309 = scmp.ne.s32.totalorder %s301, %s304
      %p310 = scmp.eq.s32.totalorder %s24, 0
      %p311 = por %p309, %p310
      %p312 = scmp.ne.s32.totalorder %s301, %s304
      %p313 = scmp.eq.s32.totalorder %s29, 3
      %p314 = por %p312, %p313
      %p315 = scmp.ne.s32.totalorder %s304, %s305
      %p316 = scmp.eq.s32.totalorder %s29, 0
      %p317 = por %p315, %p316
      %p318 = scmp.ne.s32.totalorder %s304, %s305
      %p319 = scmp.eq.s32.totalorder %s30, 3
      %p320 = por %p318, %p319
      %p322 = scmp.ne.s32.totalorder %s305, %s321
      %p323 = scmp.eq.s32.totalorder %s30, 0
      %p324 = por %p322, %p323
      %s325 = ssub.s32 %s32, %s39
      %p326 = scmp.eq.s32.totalorder %s325, 0
      %s328 = sadd.s32 %s327, 1
      %s329 = scalar_select %p326, %s327, %s328
      %p332 = pneg %p326
      %p333 = scmp.eq.s32.totalorder %s24, 3
      %p334 = por %p332, %p333
      %p335 = scmp.ne.s32.totalorder %s327, %s330
      %p336 = scmp.eq.s32.totalorder %s24, 0
      %p337 = por %p335, %p336
      %p338 = scmp.ne.s32.totalorder %s327, %s330
      %p339 = scmp.eq.s32.totalorder %s29, 3
      %p340 = por %p338, %p339
      %p341 = scmp.ne.s32.totalorder %s330, %s331
      %p342 = scmp.eq.s32.totalorder %s29, 0
      %p343 = por %p341, %p342
      %p344 = scmp.ne.s32.totalorder %s330, %s331
      %p345 = scmp.eq.s32.totalorder %s30, 3
      %p346 = por %p344, %p345
      %p348 = scmp.ne.s32.totalorder %s331, %s347
      %p349 = scmp.eq.s32.totalorder %s30, 0
      %p350 = por %p348, %p349
      %s351 = ssub.s32 %s32, %s39
      %p352 = scmp.eq.s32.totalorder %s351, 0
      %s354 = sadd.s32 %s353, 1
      %s355 = scalar_select %p352, %s353, %s354
      %p358 = pneg %p352
      %p359 = scmp.eq.s32.totalorder %s24, 3
      %p360 = por %p358, %p359
      %p361 = scmp.ne.s32.totalorder %s353, %s356
      %p362 = scmp.eq.s32.totalorder %s24, 0
      %p363 = por %p361, %p362
      %p364 = scmp.ne.s32.totalorder %s353, %s356
      %p365 = scmp.eq.s32.totalorder %s29, 3
      %p366 = por %p364, %p365
      %p367 = scmp.ne.s32.totalorder %s356, %s357
      %p368 = scmp.eq.s32.totalorder %s29, 0
      %p369 = por %p367, %p368
      %p370 = scmp.ne.s32.totalorder %s356, %s357
      %p371 = scmp.eq.s32.totalorder %s30, 3
      %p372 = por %p370, %p371
      %p374 = scmp.ne.s32.totalorder %s357, %s373
      %p375 = scmp.eq.s32.totalorder %s30, 0
      %p376 = por %p374, %p375
      %s377 = ssub.s32 %s32, %s39
      %p378 = scmp.eq.s32.totalorder %s377, 0
      %s380 = sadd.s32 %s379, 1
      %s381 = scalar_select %p378, %s379, %s380
      %p384 = pneg %p378
      %p385 = scmp.eq.s32.totalorder %s24, 3
      %p386 = por %p384, %p385
      %p387 = scmp.ne.s32.totalorder %s379, %s382
      %p388 = scmp.eq.s32.totalorder %s24, 0
      %p389 = por %p387, %p388
      %p390 = scmp.ne.s32.totalorder %s379, %s382
      %p391 = scmp.eq.s32.totalorder %s29, 3
      %p392 = por %p390, %p391
      %p393 = scmp.ne.s32.totalorder %s382, %s383
      %p394 = scmp.eq.s32.totalorder %s29, 0
      %p395 = por %p393, %p394
      %p396 = scmp.ne.s32.totalorder %s382, %s383
      %p397 = scmp.eq.s32.totalorder %s30, 3
      %p398 = por %p396, %p397
      %p400 = scmp.ne.s32.totalorder %s383, %s399
      %p401 = scmp.eq.s32.totalorder %s30, 0
      %p402 = por %p400, %p401
      %s403 = ssub.s32 %s32, %s39
      %p404 = scmp.eq.s32.totalorder %s403, 0
      %s406 = sadd.s32 %s405, 1
      %s407 = scalar_select %p404, %s405, %s406
      %p410 = pneg %p404
      %p411 = scmp.eq.s32.totalorder %s24, 3
      %p412 = por %p410, %p411
      %p413 = scmp.ne.s32.totalorder %s405, %s408
      %p414 = scmp.eq.s32.totalorder %s24, 0
      %p415 = por %p413, %p414
      %p416 = scmp.ne.s32.totalorder %s405, %s408
      %p417 = scmp.eq.s32.totalorder %s29, 3
      %p418 = por %p416, %p417
      %p419 = scmp.ne.s32.totalorder %s408, %s409
      %p420 = scmp.eq.s32.totalorder %s29, 0
      %p421 = por %p419, %p420
      %p422 = scmp.ne.s32.totalorder %s408, %s409
      %p423 = scmp.eq.s32.totalorder %s30, 3
      %p424 = por %p422, %p423
      %p426 = scmp.ne.s32.totalorder %s409, %s425
      %p427 = scmp.eq.s32.totalorder %s30, 0
      %p428 = por %p426, %p427
      %s429 = ssub.s32 %s31, %s43
      %p430 = scmp.eq.s32.totalorder %s429, 0
      %s432 = sadd.s32 %s431, 1
      %s433 = scalar_select %p430, %s431, %s432
      %p436 = pneg %p430
      %p437 = scmp.eq.s32.totalorder %s24, 3
      %p438 = por %p436, %p437
      %p439 = scmp.ne.s32.totalorder %s431, %s434
      %p440 = scmp.eq.s32.totalorder %s24, 0
      %p441 = por %p439, %p440
      %p442 = scmp.ne.s32.totalorder %s431, %s434
      %p443 = scmp.eq.s32.totalorder %s29, 3
      %p444 = por %p442, %p443
      %p445 = scmp.ne.s32.totalorder %s434, %s435
      %p446 = scmp.eq.s32.totalorder %s29, 0
      %p447 = por %p445, %p446
      %p448 = scmp.ne.s32.totalorder %s434, %s435
      %p449 = scmp.eq.s32.totalorder %s30, 3
      %p450 = por %p448, %p449
      %p452 = scmp.ne.s32.totalorder %s435, %s451
      %p453 = scmp.eq.s32.totalorder %s30, 0
      %p454 = por %p452, %p453
      %p455 = scmp.le.s32.totalorder 1, %s24
      %p456 = scmp.lt.s32.totalorder %s24, 5
      %p457 = pnand %p455, %p456
      %p458 = pneg %p457
      // Predicated region
      $region9: #{encoder_forward.1} parent=5 // pred_check
        _
      $region10: #{encoder_forward.1} parent=5 // pred_check_branch
        %460 = sbr.rel (%p457) target = $region12
      $region11: #{encoder_forward.1} parent=5 // pred_region
        %s461 = ssub.s32 %s24, 1
        // Predicated region
        $region13: #{encoder_forward.1} parent=11 // pred_check
          %p462 = pneg %p83
        $region14: #{encoder_forward.1} parent=11 // pred_check_branch
          %464 = sbr.rel (%p462) target = $region16
        $region15: #{encoder_forward.1} parent=11 // pred_region
          _
        $region16: #{encoder_forward.1} parent=11 // pred_fallthru
          _
      $region12: #{encoder_forward.1} parent=5 // pred_fallthru
        _
      %p465 = scmp.lt.s32.totalorder %s24, 4
      // Predicated region
      $region17: #{encoder_forward.1} parent=5 // pred_check
        %p466 = pneg %p465
      $region18: #{encoder_forward.1} parent=5 // pred_check_branch
        %468 = sbr.rel (%p466) target = $region20
      $region19: #{encoder_forward.1} parent=5 // pred_region
        // Predicated region
        $region21: #{encoder_forward.1} parent=19 // pred_check
          %p469 = pneg %p56
        $region22: #{encoder_forward.1} parent=19 // pred_check_branch
          %471 = sbr.rel (%p469) target = $region24
        $region23: #{encoder_forward.1} parent=19 // pred_region
          %p472 = scmp.lt.s32.totalorder %s31, 1
          %s473 = scalar_select %p472, %s31, 1
          %s474 = smul.addr %s473, 8
          %s475 = scalar_lea.vmem %s0, %s474
        $region24: #{encoder_forward.1} parent=19 // pred_fallthru
          _
        // Predicated region
        $region25: #{encoder_forward.1} parent=19 // pred_check
          %p476 = pneg %p103
        $region26: #{encoder_forward.1} parent=19 // pred_check_branch
          %478 = sbr.rel (%p476) target = $region28
        $region27: #{encoder_forward.1} parent=19 // pred_region
          %p479 = scmp.lt.s32.totalorder %s31, 1
          %s480 = scalar_select %p479, %s31, 1
          %s481 = scalar_lea.vmem %s2, %s480
        $region28: #{encoder_forward.1} parent=19 // pred_fallthru
          _
        // Predicated region
        $region29: #{encoder_forward.1} parent=19 // pred_check
          %p482 = pneg %p129
        $region30: #{encoder_forward.1} parent=19 // pred_check_branch
          %484 = sbr.rel (%p482) target = $region32
        $region31: #{encoder_forward.1} parent=19 // pred_region
          %p485 = scmp.lt.s32.totalorder %s32, 1
          %s486 = scalar_select %p485, %s32, 1
          %s487 = smul.addr %s486, 4
          %s488 = smul.addr %s487, 4
          %s489 = scalar_lea.vmem %s3, %s488
        $region32: #{encoder_forward.1} parent=19 // pred_fallthru
          _
        // Predicated region
        $region33: #{encoder_forward.1} parent=19 // pred_check
          %p490 = pneg %p155
        $region34: #{encoder_forward.1} parent=19 // pred_check_branch
          %492 = sbr.rel (%p490) target = $region36
        $region35: #{encoder_forward.1} parent=19 // pred_region
          %p493 = scmp.lt.s32.totalorder %s32, 1
          %s494 = scalar_select %p493, %s32, 1
          %s495 = scalar_lea.vmem %s4, %s494
        $region36: #{encoder_forward.1} parent=19 // pred_fallthru
          _
        // Predicated region
        $region37: #{encoder_forward.1} parent=19 // pred_check
          %p496 = pneg %p181
        $region38: #{encoder_forward.1} parent=19 // pred_check_branch
          %498 = sbr.rel (%p496) target = $region40
        $region39: #{encoder_forward.1} parent=19 // pred_region
          %p499 = scmp.lt.s32.totalorder %s32, 1
          %s500 = scalar_select %p499, %s32, 1
          %s501 = smul.addr %s500, 4
          %s502 = smul.addr %s501, 4
          %s503 = scalar_lea.vmem %s5, %s502
        $region40: #{encoder_forward.1} parent=19 // pred_fallthru
          _
        // Predicated region
        $region41: #{encoder_forward.1} parent=19 // pred_check
          %p504 = pneg %p207
        $region42: #{encoder_forward.1} parent=19 // pred_check_branch
          %506 = sbr.rel (%p504) target = $region44
        $region43: #{encoder_forward.1} parent=19 // pred_region
          %p507 = scmp.lt.s32.totalorder %s32, 1
          %s508 = scalar_select %p507, %s32, 1
          %s509 = scalar_lea.vmem %s6, %s508
        $region44: #{encoder_forward.1} parent=19 // pred_fallthru
          _
        // Predicated region
        $region45: #{encoder_forward.1} parent=19 // pred_check
          %p510 = pneg %p233
        $region46: #{encoder_forward.1} parent=19 // pred_check_branch
          %512 = sbr.rel (%p510) target = $region48
        $region47: #{encoder_forward.1} parent=19 // pred_region
          %p513 = scmp.lt.s32.totalorder %s32, 1
          %s514 = scalar_select %p513, %s32, 1
          %s515 = smul.addr %s514, 4
          %s516 = smul.addr %s515, 4
          %s517 = scalar_lea.vmem %s7, %s516
        $region48: #{encoder_forward.1} parent=19 // pred_fallthru
          _
        // Predicated region
        $region49: #{encoder_forward.1} parent=19 // pred_check
          %p518 = pneg %p259
        $region50: #{encoder_forward.1} parent=19 // pred_check_branch
          %520 = sbr.rel (%p518) target = $region52
        $region51: #{encoder_forward.1} parent=19 // pred_region
          %p521 = scmp.lt.s32.totalorder %s32, 1
          %s522 = scalar_select %p521, %s32, 1
          %s523 = scalar_lea.vmem %s8, %s522
        $region52: #{encoder_forward.1} parent=19 // pred_fallthru
          _
        // Predicated region
        $region53: #{encoder_forward.1} parent=19 // pred_check
          %p524 = pneg %p285
        $region54: #{encoder_forward.1} parent=19 // pred_check_branch
          %526 = sbr.rel (%p524) target = $region56
        $region55: #{encoder_forward.1} parent=19 // pred_region
          %p527 = scmp.lt.s32.totalorder %s32, 1
          %s528 = scalar_select %p527, %s32, 1
          %s529 = smul.addr %s528, 8
          %s530 = smul.addr %s529, 4
          %s531 = scalar_lea.vmem %s9, %s530
        $region56: #{encoder_forward.1} parent=19 // pred_fallthru
          _
        // Predicated region
        $region57: #{encoder_forward.1} parent=19 // pred_check
          %p532 = pneg %p311
        $region58: #{encoder_forward.1} parent=19 // pred_check_branch
          %534 = sbr.rel (%p532) target = $region60
        $region59: #{encoder_forward.1} parent=19 // pred_region
          %p535 = scmp.lt.s32.totalorder %s32, 1
          %s536 = scalar_select %p535, %s32, 1
          %s537 = scalar_lea.vmem %s10, %s536
        $region60: #{encoder_forward.1} parent=19 // pred_fallthru
          _
        // Predicated region
        $region61: #{encoder_forward.1} parent=19 // pred_check
          %p538 = pneg %p337
        $region62: #{encoder_forward.1} parent=19 // pred_check_branch
          %540 = sbr.rel (%p538) target = $region64
        $region63: #{encoder_forward.1} parent=19 // pred_region
          %p541 = scmp.lt.s32.totalorder %s32, 1
          %s542 = scalar_select %p541, %s32, 1
          %s543 = scalar_lea.vmem %s11, %s542
        $region64: #{encoder_forward.1} parent=19 // pred_fallthru
          _
        // Predicated region
        $region65: #{encoder_forward.1} parent=19 // pred_check
          %p544 = pneg %p363
        $region66: #{encoder_forward.1} parent=19 // pred_check_branch
          %546 = sbr.rel (%p544) target = $region68
        $region67: #{encoder_forward.1} parent=19 // pred_region
          %p547 = scmp.lt.s32.totalorder %s32, 1
          %s548 = scalar_select %p547, %s32, 1
          %s549 = scalar_lea.vmem %s12, %s548
        $region68: #{encoder_forward.1} parent=19 // pred_fallthru
          _
        // Predicated region
        $region69: #{encoder_forward.1} parent=19 // pred_check
          %p550 = pneg %p389
        $region70: #{encoder_forward.1} parent=19 // pred_check_branch
          %552 = sbr.rel (%p550) target = $region72
        $region71: #{encoder_forward.1} parent=19 // pred_region
          %p553 = scmp.lt.s32.totalorder %s32, 1
          %s554 = scalar_select %p553, %s32, 1
          %s555 = scalar_lea.vmem %s13, %s554
        $region72: #{encoder_forward.1} parent=19 // pred_fallthru
          _
        // Predicated region
        $region73: #{encoder_forward.1} parent=19 // pred_check
          %p556 = pneg %p415
        $region74: #{encoder_forward.1} parent=19 // pred_check_branch
          %558 = sbr.rel (%p556) target = $region76
        $region75: #{encoder_forward.1} parent=19 // pred_region
          %p559 = scmp.lt.s32.totalorder %s32, 1
          %s560 = scalar_select %p559, %s32, 1
          %s561 = scalar_lea.vmem %s14, %s560
        $region76: #{encoder_forward.1} parent=19 // pred_fallthru
          _
      $region20: #{encoder_forward.1} parent=5 // pred_fallthru
        _
      %p562 = scmp.le.s32.totalorder 1, %s24
      %p563 = scmp.lt.s32.totalorder %s24, 5
      %p564 = pnand %p562, %p563
      %p565 = pneg %p564
      // Predicated region
      $region77: #{encoder_forward.1} parent=5 // pred_check
        _
      $region78: #{encoder_forward.1} parent=5 // pred_check_branch
        %567 = sbr.rel (%p564) target = $region80
      $region79: #{encoder_forward.1} parent=5 // pred_region
        %s568 = ssub.s32 %s24, 1
        %p569 = scmp.lt.s32.totalorder %s33, 1
        %s570 = scalar_select %p569, %s33, 1
        %s571 = smul.addr %s570, 8
        %s572 = scalar_lea.vmem %s0, %s571
        %p573 = pneg %p62
        %p574 = pneg %p59
        %p575 = pneg %p83
        %p576 = pneg %p80
        %p577 = scmp.lt.s32.totalorder %s33, 1
        %s578 = scalar_select %p577, %s33, 1
        %s579 = scalar_lea.vmem %s2, %s578
        %p580 = pneg %p109
        %p581 = pneg %p106
        %p582 = scmp.lt.s32.totalorder %s34, 1
        %s583 = scalar_select %p582, %s34, 1
        %s584 = smul.addr %s583, 4
        %s585 = smul.addr %s584, 4
        %s586 = scalar_lea.vmem %s3, %s585
        %p587 = pneg %p135
        %p588 = pneg %p132
        %p589 = scmp.lt.s32.totalorder %s34, 1
        %s590 = scalar_select %p589, %s34, 1
        %s591 = scalar_lea.vmem %s4, %s590
        %p592 = pneg %p161
        %p593 = pneg %p158
        %p594 = scmp.lt.s32.totalorder %s34, 1
        %s595 = scalar_select %p594, %s34, 1
        %s596 = smul.addr %s595, 4
        %s597 = smul.addr %s596, 4
        %s598 = scalar_lea.vmem %s5, %s597
        %p599 = pneg %p187
        %p600 = pneg %p184
        %p601 = scmp.lt.s32.totalorder %s34, 1
        %s602 = scalar_select %p601, %s34, 1
        %s603 = scalar_lea.vmem %s6, %s602
        %p604 = pneg %p213
        %p605 = pneg %p210
        %p606 = scmp.lt.s32.totalorder %s34, 1
        %s607 = scalar_select %p606, %s34, 1
        %s608 = smul.addr %s607, 4
        %s609 = smul.addr %s608, 4
        %s610 = scalar_lea.vmem %s7, %s609
        %p611 = pneg %p239
        %p612 = pneg %p236
        %p613 = scmp.lt.s32.totalorder %s34, 1
        %s614 = scalar_select %p613, %s34, 1
        %s615 = scalar_lea.vmem %s8, %s614
        %p616 = pneg %p265
        %p617 = pneg %p262
        %p618 = scmp.lt.s32.totalorder %s34, 1
        %s619 = scalar_select %p618, %s34, 1
        %s620 = smul.addr %s619, 8
        %s621 = smul.addr %s620, 4
        %s622 = scalar_lea.vmem %s9, %s621
        %p623 = pneg %p291
        %p624 = pneg %p288
        %p625 = scmp.lt.s32.totalorder %s34, 1
        %s626 = scalar_select %p625, %s34, 1
        %s627 = scalar_lea.vmem %s10, %s626
        %p628 = pneg %p317
        %p629 = pneg %p314
        %p630 = scmp.lt.s32.totalorder %s34, 1
        %s631 = scalar_select %p630, %s34, 1
        %s632 = scalar_lea.vmem %s11, %s631
        %p633 = pneg %p343
        %p634 = pneg %p340
        %p635 = scmp.lt.s32.totalorder %s34, 1
        %s636 = scalar_select %p635, %s34, 1
        %s637 = scalar_lea.vmem %s12, %s636
        %p638 = pneg %p369
        %p639 = pneg %p366
        %p640 = scmp.lt.s32.totalorder %s34, 1
        %s641 = scalar_select %p640, %s34, 1
        %s642 = scalar_lea.vmem %s13, %s641
        %p643 = pneg %p395
        %p644 = pneg %p392
        %p645 = scmp.lt.s32.totalorder %s34, 1
        %s646 = scalar_select %p645, %s34, 1
        %s647 = scalar_lea.vmem %s14, %s646
        %p648 = pneg %p421
        %p649 = pneg %p418
        %p650 = pneg %p447
        %p651 = pneg %p444
        %s652 = sand.u32 %s434, 1
        %s653 = scalar_lea.sflag [#allocation4], %s652
        %s654 = sand.u32 %s434, 1
        %s655 = smul.addr %s654, 8
        %s656 = scalar_lea.vmem [#allocation3], %s655
        %p657 = scmp.lt.s32.totalorder %s33, 1
        %s658 = scalar_select %p657, %s33, 1
        %s659 = smul.addr %s658, 8
        %s660 = scalar_lea.vmem %s0, %s659
        %p661 = scmp.lt.s32.totalorder %s33, 1
        %s662 = scalar_select %p661, %s33, 1
        %s663 = scalar_lea.vmem %s2, %s662
        %p664 = scmp.lt.s32.totalorder %s34, 1
        %s665 = scalar_select %p664, %s34, 1
        %s666 = smul.addr %s665, 4
        %s667 = smul.addr %s666, 4
        %s668 = scalar_lea.vmem %s3, %s667
        %p669 = scmp.lt.s32.totalorder %s34, 1
        %s670 = scalar_select %p669, %s34, 1
        %s671 = scalar_lea.vmem %s4, %s670
        %p672 = scmp.lt.s32.totalorder %s34, 1
        %s673 = scalar_select %p672, %s34, 1
        %s674 = smul.addr %s673, 4
        %s675 = smul.addr %s674, 4
        %s676 = scalar_lea.vmem %s5, %s675
        %p677 = scmp.lt.s32.totalorder %s34, 1
        %s678 = scalar_select %p677, %s34, 1
        %s679 = scalar_lea.vmem %s6, %s678
        %p680 = scmp.lt.s32.totalorder %s34, 1
        %s681 = scalar_select %p680, %s34, 1
        %s682 = smul.addr %s681, 4
        %s683 = smul.addr %s682, 4
        %s684 = scalar_lea.vmem %s7, %s683
        %p685 = scmp.lt.s32.totalorder %s34, 1
        %s686 = scalar_select %p685, %s34, 1
        %s687 = scalar_lea.vmem %s8, %s686
        %p688 = scmp.lt.s32.totalorder %s34, 1
        %s689 = scalar_select %p688, %s34, 1
        %s690 = smul.addr %s689, 8
        %s691 = smul.addr %s690, 4
        %s692 = scalar_lea.vmem %s9, %s691
        %p693 = scmp.lt.s32.totalorder %s34, 1
        %s694 = scalar_select %p693, %s34, 1
        %s695 = scalar_lea.vmem %s10, %s694
        %p696 = scmp.lt.s32.totalorder %s34, 1
        %s697 = scalar_select %p696, %s34, 1
        %s698 = scalar_lea.vmem %s11, %s697
        %p699 = scmp.lt.s32.totalorder %s34, 1
        %s700 = scalar_select %p699, %s34, 1
        %s701 = scalar_lea.vmem %s12, %s700
        %p702 = scmp.lt.s32.totalorder %s34, 1
        %s703 = scalar_select %p702, %s34, 1
        %s704 = scalar_lea.vmem %s13, %s703
        %p705 = scmp.lt.s32.totalorder %s34, 1
        %s706 = scalar_select %p705, %s34, 1
        %s707 = scalar_lea.vmem %s14, %s706
        %p709 = scmp.eq.s32.totalorder %s34, 0
        // Predicated region
        $region81: #{encoder_forward.1} parent=79 // pred_check
          %p710 = pneg %p709
        $region82: #{encoder_forward.1} parent=79 // pred_check_branch
          %712 = sbr.rel (%p710) target = $region84
        $region83: #{encoder_forward.1} parent=79 // pred_region
          %v713 = vld [vmem:[%s660] sm:$0xff]
          %v714 = vmul.f32 %v713, 5.656854
          %v715 = vld [vmem:[%s1] sm:$0xff]
          %v716 = vadd.f32 %v714, %v715
          %vm717 = vcmask 261120
          %718 = vst.msk [vmem:[#allocation2] sm:$0xff] %vm717, %v716
        $region84: #{encoder_forward.1} parent=79 // pred_fallthru
          _
        %v719 = vld [vmem:[#allocation2] sm:$0xff]
        %v720 = vld [vmem:[%s663] sm:$0x1]
        %v721 = vpack.c.bf16 %v719, %v719
        %v722 = vld [vmem:[%s668] sm:$0xf]
        %v723 = vld [vmem:[%s668 + $0x4] sm:$0xf]
        %v724 = vld [vmem:[%s668 + $0x8] sm:$0xf]
        %v725 = vld [vmem:[%s668 + $0xc] sm:$0xf]
        %v726 = vld [vmem:[%s671] sm:$0x1]
        %v728 = vlaneseq
        %v729 = vshrl.u32 %v728, 7
        %v730 = vsub.s32 0, %v729
        %v731 = vrot.slane %v726, %v730
        %v737 = vunpack.c.l.b16 %v722
        %v738 = vunpack.c.l.b16 %v723
        %v739 = vunpack.c.l.b16 %v724
        %v740 = vunpack.c.l.b16 %v725
        %v741 = vpack.c.b16 %v738, %v737
        %v742 = vpack.c.b16 %v740, %v739
        %vm745 = vcmask 261120
        %v747 = vsel %vm745, %v721, 0
        %749 = vmatprep.subr.bf16.mxu0 0
        %750 = vmatpush1.bf16.msra.mxu0 %v741
        %751 = vmatprep.subr.bf16.mxu0 0
        %752 = vmatpush1.bf16.msra.mxu0 %v742
        %753 = vmatprep.subr.bf16.mxu0 0
        %754 = vmatpush1.bf16.msra.mxu0 0
        %755 = vmatprep.subr.bf16.mxu0 0
        %756 = vmatpush1.bf16.msra.mxu0 0
        %757 = vmatprep.subr.bf16.mxu0 0
        %758 = vmatpush1.bf16.msra.mxu0 0
        %759 = vmatprep.subr.bf16.mxu0 0
        %760 = vmatpush1.bf16.msra.mxu0 0
        %761 = vmatprep.subr.bf16.mxu0 0
        %762 = vmatpush1.bf16.msra.mxu0 0
        %763 = vmatprep.subr.bf16.mxu0 0
        %764 = vmatpush1.bf16.msra.mxu0 0
        %765 = vmatprep.subr.bf16.mxu0 0
        %766 = vmatpush1.bf16.msra.mxu0 0
        %767 = vmatprep.subr.bf16.mxu0 0
        %768 = vmatpush1.bf16.msra.mxu0 0
        %769 = vmatprep.subr.bf16.mxu0 0
        %770 = vmatpush1.bf16.msra.mxu0 0
        %771 = vmatprep.subr.bf16.mxu0 0
        %772 = vmatpush1.bf16.msra.mxu0 0
        %773 = vmatprep.subr.bf16.mxu0 0
        %774 = vmatpush1.bf16.msra.mxu0 0
        %775 = vmatprep.subr.bf16.mxu0 0
        %776 = vmatpush1.bf16.msra.mxu0 0
        %777 = vmatprep.subr.bf16.mxu0 0
        %778 = vmatpush1.bf16.msra.mxu0 0
        %779 = vmatprep.subr.bf16.mxu0 0
        %780 = vmatpush1.bf16.msra.mxu0 0
        %781 = vmatprep.mubr.bf16.mxu0 0
        %782 = vmatmul.mubr.bf16.gmra.mrb[0].mxu0 %v747
        %v783 = vpop.f32.mrb[0].mxu0
        %v784 = vadd.f32 %v731, %v783
        %v785 = vpop.f32.mrb[0].mxu0
        %v786 = vpop.f32.mrb[0].mxu0
        %v787 = vpop.f32.mrb[0].mxu0
        %788 = vdwg.mxu0
        %790 = vrot.lane.b32.xlu0 %v784, 120
        %v791 = vpop.permute.xlu0 %790
        %793 = vrot.lane.b32.xlu0 %v784, 112
        %v794 = vpop.permute.xlu0 %793
        %796 = vrot.lane.b32.xlu0 %v784, 104
        %v797 = vpop.permute.xlu0 %796
        %799 = vrot.lane.b32.xlu0 %v784, 96
        %v800 = vpop.permute.xlu0 %799
        %802 = vrot.lane.b32.xlu0 %v784, 88
        %v803 = vpop.permute.xlu0 %802
        %805 = vrot.lane.b32.xlu0 %v784, 80
        %v806 = vpop.permute.xlu0 %805
        %808 = vrot.lane.b32.xlu0 %v784, 72
        %v809 = vpop.permute.xlu0 %808
        %811 = vrot.lane.b32.xlu0 %v784, 64
        %v812 = vpop.permute.xlu0 %811
        %814 = vrot.lane.b32.xlu0 %v784, 56
        %v815 = vpop.permute.xlu0 %814
        %817 = vrot.lane.b32.xlu0 %v784, 48
        %v818 = vpop.permute.xlu0 %817
        %820 = vrot.lane.b32.xlu0 %v784, 40
        %v821 = vpop.permute.xlu0 %820
        %v823 = vcombine.low %v784, %v794
        %v824 = vcombine.high %v784, %v794
        %v826 = vunpack.c.l.s4 1983009808
        %v827 = vunpack.c.0.s8 %v826
        %v828 = vlaneseq
        %v829 = vshrl.u32 %v828, 7
        %v830 = vsub.s32 %v827, %v829
        %v831 = vrot.slane %v823, %v830
        %v833 = vunpack.c.l.s4 1983009808
        %v834 = vunpack.c.0.s8 %v833
        %v835 = vlaneseq
        %v836 = vshrl.u32 %v835, 7
        %v837 = vsub.s32 %v834, %v836
        %v838 = vrot.slane %v824, %v837
        %v839 = vcombine.low %v791, %v797
        %v840 = vcombine.high %v791, %v797
        %v842 = vunpack.c.l.s4 1983009808
        %v843 = vunpack.c.0.s8 %v842
        %v844 = vlaneseq
        %v845 = vshrl.u32 %v844, 7
        %v846 = vsub.s32 %v843, %v845
        %v847 = vrot.slane %v839, %v846
        %v849 = vunpack.c.l.s4 1983009808
        %v850 = vunpack.c.0.s8 %v849
        %v851 = vlaneseq
        %v852 = vshrl.u32 %v851, 7
        %v853 = vsub.s32 %v850, %v852
        %v854 = vrot.slane %v840, %v853
        %v855 = vcombine.low %v800, %v806
        %v856 = vcombine.high %v800, %v806
        %v858 = vunpack.c.l.s4 1983009808
        %v859 = vunpack.c.0.s8 %v858
        %v860 = vlaneseq
        %v861 = vshrl.u32 %v860, 7
        %v862 = vsub.s32 %v859, %v861
        %v863 = vrot.slane %v855, %v862
        %v865 = vunpack.c.l.s4 1983009808
        %v866 = vunpack.c.0.s8 %v865
        %v867 = vlaneseq
        %v868 = vshrl.u32 %v867, 7
        %v869 = vsub.s32 %v866, %v868
        %v870 = vrot.slane %v856, %v869
        %v871 = vcombine.low %v803, %v809
        %v872 = vcombine.high %v803, %v809
        %v874 = vunpack.c.l.s4 1983009808
        %v875 = vunpack.c.0.s8 %v874
        %v876 = vlaneseq
        %v877 = vshrl.u32 %v876, 7
        %v878 = vsub.s32 %v875, %v877
        %v879 = vrot.slane %v871, %v878
        %v881 = vunpack.c.l.s4 1983009808
        %v882 = vunpack.c.0.s8 %v881
        %v883 = vlaneseq
        %v884 = vshrl.u32 %v883, 7
        %v885 = vsub.s32 %v882, %v884
        %v886 = vrot.slane %v872, %v885
        %v887 = vcombine.low %v831, %v847
        %v888 = vcombine.high %v831, %v847
        %v890 = vunpack.c.l.s4 1934713408
        %v891 = vunpack.c.0.s8 %v890
        %v892 = vlaneseq
        %v893 = vshrl.u32 %v892, 7
        %v894 = vsub.s32 %v891, %v893
        %v895 = vrot.slane %v887, %v894
        %v897 = vunpack.c.l.s4 1934713408
        %v898 = vunpack.c.0.s8 %v897
        %v899 = vlaneseq
        %v900 = vshrl.u32 %v899, 7
        %v901 = vsub.s32 %v898, %v900
        %v902 = vrot.slane %v888, %v901
        %v903 = vcombine.low %v838, %v854
        %v904 = vcombine.high %v838, %v854
        %v906 = vunpack.c.l.s4 1934713408
        %v907 = vunpack.c.0.s8 %v906
        %v908 = vlaneseq
        %v909 = vshrl.u32 %v908, 7
        %v910 = vsub.s32 %v907, %v909
        %v911 = vrot.slane %v903, %v910
        %v913 = vunpack.c.l.s4 1934713408
        %v914 = vunpack.c.0.s8 %v913
        %v915 = vlaneseq
        %v916 = vshrl.u32 %v915, 7
        %v917 = vsub.s32 %v914, %v916
        %v918 = vrot.slane %v904, %v917
        %v919 = vcombine.low %v863, %v879
        %v920 = vcombine.high %v863, %v879
        %v922 = vunpack.c.l.s4 1934713408
        %v923 = vunpack.c.0.s8 %v922
        %v924 = vlaneseq
        %v925 = vshrl.u32 %v924, 7
        %v926 = vsub.s32 %v923, %v925
        %v927 = vrot.slane %v919, %v926
        %v929 = vunpack.c.l.s4 1934713408
        %v930 = vunpack.c.0.s8 %v929
        %v931 = vlaneseq
        %v932 = vshrl.u32 %v931, 7
        %v933 = vsub.s32 %v930, %v932
        %v934 = vrot.slane %v920, %v933
        %v935 = vcombine.low %v870, %v886
        %v936 = vcombine.high %v870, %v886
        %v938 = vunpack.c.l.s4 1934713408
        %v939 = vunpack.c.0.s8 %v938
        %v940 = vlaneseq
        %v941 = vshrl.u32 %v940, 7
        %v942 = vsub.s32 %v939, %v941
        %v943 = vrot.slane %v935, %v942
        %v945 = vunpack.c.l.s4 1934713408
        %v946 = vunpack.c.0.s8 %v945
        %v947 = vlaneseq
        %v948 = vshrl.u32 %v947, 7
        %v949 = vsub.s32 %v946, %v948
        %v950 = vrot.slane %v936, %v949
        %v951 = vcombine.low %v895, %v927
        %v952 = vcombine.high %v895, %v927
        %v953 = vcombine.low %v902, %v934
        %v954 = vcombine.high %v902, %v934
        %v955 = vcombine.low %v911, %v943
        %v956 = vcombine.high %v911, %v943
        %v957 = vcombine.low %v918, %v950
        %v958 = vcombine.high %v918, %v950
        %v959 = vcombine.low %v812, %v818
        %v960 = vcombine.high %v812, %v818
        %v962 = vunpack.c.l.s4 1983009808
        %v963 = vunpack.c.0.s8 %v962
        %v964 = vlaneseq
        %v965 = vshrl.u32 %v964, 7
        %v966 = vsub.s32 %v963, %v965
        %v967 = vrot.slane %v959, %v966
        %v969 = vunpack.c.l.s4 1983009808
        %v970 = vunpack.c.0.s8 %v969
        %v971 = vlaneseq
        %v972 = vshrl.u32 %v971, 7
        %v973 = vsub.s32 %v970, %v972
        %v974 = vrot.slane %v960, %v973
        %v975 = vcombine.low %v815, %v821
        %v976 = vcombine.high %v815, %v821
        %v978 = vunpack.c.l.s4 1983009808
        %v979 = vunpack.c.0.s8 %v978
        %v980 = vlaneseq
        %v981 = vshrl.u32 %v980, 7
        %v982 = vsub.s32 %v979, %v981
        %v983 = vrot.slane %v975, %v982
        %v985 = vunpack.c.l.s4 1983009808
        %v986 = vunpack.c.0.s8 %v985
        %v987 = vlaneseq
        %v988 = vshrl.u32 %v987, 7
        %v989 = vsub.s32 %v986, %v988
        %v990 = vrot.slane %v976, %v989
        %v991 = vcombine.low %v967, %v983
        %v992 = vcombine.high %v967, %v983
        %v994 = vunpack.c.l.s4 1934713408
        %v995 = vunpack.c.0.s8 %v994
        %v996 = vlaneseq
        %v997 = vshrl.u32 %v996, 7
        %v998 = vsub.s32 %v995, %v997
        %v999 = vrot.slane %v991, %v998
        %v1001 = vunpack.c.l.s4 1934713408
        %v1002 = vunpack.c.0.s8 %v1001
        %v1003 = vlaneseq
        %v1004 = vshrl.u32 %v1003, 7
        %v1005 = vsub.s32 %v1002, %v1004
        %v1006 = vrot.slane %v992, %v1005
        %v1007 = vcombine.low %v974, %v990
        %v1008 = vcombine.high %v974, %v990
        %v1010 = vunpack.c.l.s4 1934713408
        %v1011 = vunpack.c.0.s8 %v1010
        %v1012 = vlaneseq
        %v1013 = vshrl.u32 %v1012, 7
        %v1014 = vsub.s32 %v1011, %v1013
        %v1015 = vrot.slane %v1007, %v1014
        %v1017 = vunpack.c.l.s4 1934713408
        %v1018 = vunpack.c.0.s8 %v1017
        %v1019 = vlaneseq
        %v1020 = vshrl.u32 %v1019, 7
        %v1021 = vsub.s32 %v1018, %v1020
        %v1022 = vrot.slane %v1008, %v1021
        %v1023 = vcombine.high %v999, 0.0
        %v1024 = vcombine.high %v1006, 0.0
        %v1025 = vcombine.high %v1015, 0.0
        %v1026 = vcombine.high %v1022, 0.0
        %v1027 = vcombine.low %v951, %v953
        %v1028 = vcombine.high %v951, %v953
        %v1030 = vunpack.c.l.s4 1983009808
        %v1031 = vunpack.c.0.s8 %v1030
        %v1032 = vlaneseq
        %v1033 = vshrl.u32 %v1032, 7
        %v1034 = vsub.s32 %v1031, %v1033
        %v1035 = vrot.slane %v1027, %v1034
        %v1037 = vunpack.c.l.s4 1983009808
        %v1038 = vunpack.c.0.s8 %v1037
        %v1039 = vlaneseq
        %v1040 = vshrl.u32 %v1039, 7
        %v1041 = vsub.s32 %v1038, %v1040
        %v1042 = vrot.slane %v1028, %v1041
        %v1043 = vcombine.low %v952, %v954
        %v1044 = vcombine.high %v952, %v954
        %v1046 = vunpack.c.l.s4 1983009808
        %v1047 = vunpack.c.0.s8 %v1046
        %v1048 = vlaneseq
        %v1049 = vshrl.u32 %v1048, 7
        %v1050 = vsub.s32 %v1047, %v1049
        %v1051 = vrot.slane %v1043, %v1050
        %v1053 = vunpack.c.l.s4 1983009808
        %v1054 = vunpack.c.0.s8 %v1053
        %v1055 = vlaneseq
        %v1056 = vshrl.u32 %v1055, 7
        %v1057 = vsub.s32 %v1054, %v1056
        %v1058 = vrot.slane %v1044, %v1057
        %v1059 = vcombine.low %v955, %v957
        %v1060 = vcombine.high %v955, %v957
        %v1062 = vunpack.c.l.s4 1983009808
        %v1063 = vunpack.c.0.s8 %v1062
        %v1064 = vlaneseq
        %v1065 = vshrl.u32 %v1064, 7
        %v1066 = vsub.s32 %v1063, %v1065
        %v1067 = vrot.slane %v1059, %v1066
        %v1069 = vunpack.c.l.s4 1983009808
        %v1070 = vunpack.c.0.s8 %v1069
        %v1071 = vlaneseq
        %v1072 = vshrl.u32 %v1071, 7
        %v1073 = vsub.s32 %v1070, %v1072
        %v1074 = vrot.slane %v1060, %v1073
        %v1075 = vcombine.low %v956, %v958
        %v1076 = vcombine.high %v956, %v958
        %v1078 = vunpack.c.l.s4 1983009808
        %v1079 = vunpack.c.0.s8 %v1078
        %v1080 = vlaneseq
        %v1081 = vshrl.u32 %v1080, 7
        %v1082 = vsub.s32 %v1079, %v1081
        %v1083 = vrot.slane %v1075, %v1082
        %v1085 = vunpack.c.l.s4 1983009808
        %v1086 = vunpack.c.0.s8 %v1085
        %v1087 = vlaneseq
        %v1088 = vshrl.u32 %v1087, 7
        %v1089 = vsub.s32 %v1086, %v1088
        %v1090 = vrot.slane %v1076, %v1089
        %v1091 = vcombine.low %v1035, %v1051
        %v1092 = vcombine.high %v1035, %v1051
        %v1094 = vunpack.c.l.s4 1934713408
        %v1095 = vunpack.c.0.s8 %v1094
        %v1096 = vlaneseq
        %v1097 = vshrl.u32 %v1096, 7
        %v1098 = vsub.s32 %v1095, %v1097
        %v1099 = vrot.slane %v1091, %v1098
        %v1101 = vunpack.c.l.s4 1934713408
        %v1102 = vunpack.c.0.s8 %v1101
        %v1103 = vlaneseq
        %v1104 = vshrl.u32 %v1103, 7
        %v1105 = vsub.s32 %v1102, %v1104
        %v1106 = vrot.slane %v1092, %v1105
        %v1107 = vcombine.low %v1042, %v1058
        %v1108 = vcombine.high %v1042, %v1058
        %v1110 = vunpack.c.l.s4 1934713408
        %v1111 = vunpack.c.0.s8 %v1110
        %v1112 = vlaneseq
        %v1113 = vshrl.u32 %v1112, 7
        %v1114 = vsub.s32 %v1111, %v1113
        %v1115 = vrot.slane %v1107, %v1114
        %v1117 = vunpack.c.l.s4 1934713408
        %v1118 = vunpack.c.0.s8 %v1117
        %v1119 = vlaneseq
        %v1120 = vshrl.u32 %v1119, 7
        %v1121 = vsub.s32 %v1118, %v1120
        %v1122 = vrot.slane %v1108, %v1121
        %v1123 = vcombine.low %v1067, %v1083
        %v1124 = vcombine.high %v1067, %v1083
        %v1126 = vunpack.c.l.s4 1934713408
        %v1127 = vunpack.c.0.s8 %v1126
        %v1128 = vlaneseq
        %v1129 = vshrl.u32 %v1128, 7
        %v1130 = vsub.s32 %v1127, %v1129
        %v1131 = vrot.slane %v1123, %v1130
        %v1133 = vunpack.c.l.s4 1934713408
        %v1134 = vunpack.c.0.s8 %v1133
        %v1135 = vlaneseq
        %v1136 = vshrl.u32 %v1135, 7
        %v1137 = vsub.s32 %v1134, %v1136
        %v1138 = vrot.slane %v1124, %v1137
        %v1139 = vcombine.low %v1074, %v1090
        %v1140 = vcombine.high %v1074, %v1090
        %v1142 = vunpack.c.l.s4 1934713408
        %v1143 = vunpack.c.0.s8 %v1142
        %v1144 = vlaneseq
        %v1145 = vshrl.u32 %v1144, 7
        %v1146 = vsub.s32 %v1143, %v1145
        %v1147 = vrot.slane %v1139, %v1146
        %v1149 = vunpack.c.l.s4 1934713408
        %v1150 = vunpack.c.0.s8 %v1149
        %v1151 = vlaneseq
        %v1152 = vshrl.u32 %v1151, 7
        %v1153 = vsub.s32 %v1150, %v1152
        %v1154 = vrot.slane %v1140, %v1153
        %v1155 = vcombine.low %v1099, %v1131
        %v1156 = vcombine.high %v1099, %v1131
        %v1157 = vcombine.low %v1106, %v1138
        %v1158 = vcombine.high %v1106, %v1138
        %v1159 = vcombine.low %v1115, %v1147
        %v1160 = vcombine.high %v1115, %v1147
        %v1161 = vcombine.low %v1122, %v1154
        %v1162 = vcombine.high %v1122, %v1154
        %v1163 = vcombine.low %v999, %v1006
        %v1165 = vunpack.c.l.s4 1983009808
        %v1166 = vunpack.c.0.s8 %v1165
        %v1167 = vlaneseq
        %v1168 = vshrl.u32 %v1167, 7
        %v1169 = vsub.s32 %v1166, %v1168
        %v1170 = vrot.slane %v1163, %v1169
        %v1171 = vcombine.low %v1023, %v1024
        %v1173 = vunpack.c.l.s4 1983009808
        %v1174 = vunpack.c.0.s8 %v1173
        %v1175 = vlaneseq
        %v1176 = vshrl.u32 %v1175, 7
        %v1177 = vsub.s32 %v1174, %v1176
        %v1178 = vrot.slane %v1171, %v1177
        %v1179 = vcombine.low %v1015, %v1022
        %v1181 = vunpack.c.l.s4 1983009808
        %v1182 = vunpack.c.0.s8 %v1181
        %v1183 = vlaneseq
        %v1184 = vshrl.u32 %v1183, 7
        %v1185 = vsub.s32 %v1182, %v1184
        %v1186 = vrot.slane %v1179, %v1185
        %v1187 = vcombine.low %v1025, %v1026
        %v1189 = vunpack.c.l.s4 1983009808
        %v1190 = vunpack.c.0.s8 %v1189
        %v1191 = vlaneseq
        %v1192 = vshrl.u32 %v1191, 7
        %v1193 = vsub.s32 %v1190, %v1192
        %v1194 = vrot.slane %v1187, %v1193
        %v1195 = vcombine.low %v1170, %v1178
        %v1196 = vcombine.high %v1170, %v1178
        %v1198 = vunpack.c.l.s4 1934713408
        %v1199 = vunpack.c.0.s8 %v1198
        %v1200 = vlaneseq
        %v1201 = vshrl.u32 %v1200, 7
        %v1202 = vsub.s32 %v1199, %v1201
        %v1203 = vrot.slane %v1195, %v1202
        %v1205 = vunpack.c.l.s4 1934713408
        %v1206 = vunpack.c.0.s8 %v1205
        %v1207 = vlaneseq
        %v1208 = vshrl.u32 %v1207, 7
        %v1209 = vsub.s32 %v1206, %v1208
        %v1210 = vrot.slane %v1196, %v1209
        %v1211 = vcombine.low %v1186, %v1194
        %v1212 = vcombine.high %v1186, %v1194
        %v1214 = vunpack.c.l.s4 1934713408
        %v1215 = vunpack.c.0.s8 %v1214
        %v1216 = vlaneseq
        %v1217 = vshrl.u32 %v1216, 7
        %v1218 = vsub.s32 %v1215, %v1217
        %v1219 = vrot.slane %v1211, %v1218
        %v1221 = vunpack.c.l.s4 1934713408
        %v1222 = vunpack.c.0.s8 %v1221
        %v1223 = vlaneseq
        %v1224 = vshrl.u32 %v1223, 7
        %v1225 = vsub.s32 %v1222, %v1224
        %v1226 = vrot.slane %v1212, %v1225
        %v1227 = vcombine.low %v1203, %v1219
        %v1228 = vcombine.high %v1203, %v1219
        %v1229 = vcombine.low %v1210, %v1226
        %v1230 = vcombine.high %v1210, %v1226
        %v1231 = vpack.c.bf16 %v1155, %v1155
        %v1232 = vpack.c.bf16 %v1156, %v1156
        %v1233 = vpack.c.bf16 %v1157, %v1157
        %v1234 = vpack.c.bf16 %v1158, %v1158
        %v1235 = vpack.c.bf16 %v1159, %v1159
        %v1236 = vpack.c.bf16 %v1160, %v1160
        %v1237 = vpack.c.bf16 %v1161, %v1161
        %v1238 = vpack.c.bf16 %v1162, %v1162
        %v1239 = vpack.c.bf16 %v1227, %v1227
        %v1240 = vpack.c.bf16 %v1228, %v1228
        %v1241 = vpack.c.bf16 %v1229, %v1229
        %v1242 = vpack.c.bf16 %v1230, %v1230
        %vm1243 = vcmask 64512
        %v1245 = vsel %vm1243, %v1231, 0
        %v1248 = vsel %vm1243, %v1235, 0
        %1250 = vmatprep.subr.bf16.mxu0 0
        %1251 = vmatpush1.bf16.xpose.msra.mxu0 %v1248
        %1252 = vmatprep.subr.bf16.mxu0 0
        %1253 = vmatpush1.bf16.xpose.msra.mxu0 0
        %1254 = vmatprep.subr.bf16.mxu0 0
        %1255 = vmatpush1.bf16.xpose.msra.mxu0 0
        %1256 = vmatprep.subr.bf16.mxu0 0
        %1257 = vmatpush1.bf16.xpose.msra.mxu0 0
        %1258 = vmatprep.subr.bf16.mxu0 0
        %1259 = vmatpush1.bf16.xpose.msra.mxu0 0
        %1260 = vmatprep.subr.bf16.mxu0 0
        %1261 = vmatpush1.bf16.xpose.msra.mxu0 0
        %1262 = vmatprep.subr.bf16.mxu0 0
        %1263 = vmatpush1.bf16.xpose.msra.mxu0 0
        %1264 = vmatprep.subr.bf16.mxu0 0
        %1265 = vmatpush1.bf16.xpose.msra.mxu0 0
        %1266 = vmatprep.subr.bf16.mxu0 0
        %1267 = vmatpush1.bf16.xpose.msra.mxu0 0
        %1268 = vmatprep.subr.bf16.mxu0 0
        %1269 = vmatpush1.bf16.xpose.msra.mxu0 0
        %1270 = vmatprep.subr.bf16.mxu0 0
        %1271 = vmatpush1.bf16.xpose.msra.mxu0 0
        %1272 = vmatprep.subr.bf16.mxu0 0
        %1273 = vmatpush1.bf16.xpose.msra.mxu0 0
        %1274 = vmatprep.subr.bf16.mxu0 0
        %1275 = vmatpush1.bf16.xpose.msra.mxu0 0
        %1276 = vmatprep.subr.bf16.mxu0 0
        %1277 = vmatpush1.bf16.xpose.msra.mxu0 0
        %1278 = vmatprep.subr.bf16.mxu0 0
        %1279 = vmatpush1.bf16.xpose.msra.mxu0 0
        %1280 = vmatprep.subr.bf16.mxu0 0
        %1281 = vmatpush1.bf16.xpose.msra.mxu0 0
        %1282 = vmatprep.mubr.bf16.mxu0 0
        %1283 = vmatmul.mubr.bf16.gmra.mrb[0].mxu0 %v1245
        %v1284 = vpop.f32.mrb[0].mxu0
        %v1285 = vadd.f32 0.0, %v1284
        %v1286 = vpop.f32.mrb[0].mxu0
        %v1287 = vpop.f32.mrb[0].mxu0
        %v1288 = vpop.f32.mrb[0].mxu0
        %1289 = vdwg.mxu0
        %v1291 = vsel %vm1243, %v1232, 0
        %v1294 = vsel %vm1243, %v1236, 0
        %1296 = vmatprep.subr.bf16.mxu0 0
        %1297 = vmatpush1.bf16.xpose.msra.mxu0 %v1294
        %1298 = vmatprep.subr.bf16.mxu0 0
        %1299 = vmatpush1.bf16.xpose.msra.mxu0 0
        %1300 = vmatprep.subr.bf16.mxu0 0
        %1301 = vmatpush1.bf16.xpose.msra.mxu0 0
        %1302 = vmatprep.subr.bf16.mxu0 0
        %1303 = vmatpush1.bf16.xpose.msra.mxu0 0
        %1304 = vmatprep.subr.bf16.mxu0 0
        %1305 = vmatpush1.bf16.xpose.msra.mxu0 0
        %1306 = vmatprep.subr.bf16.mxu0 0
        %1307 = vmatpush1.bf16.xpose.msra.mxu0 0
        %1308 = vmatprep.subr.bf16.mxu0 0
        %1309 = vmatpush1.bf16.xpose.msra.mxu0 0
        %1310 = vmatprep.subr.bf16.mxu0 0
        %1311 = vmatpush1.bf16.xpose.msra.mxu0 0
        %1312 = vmatprep.subr.bf16.mxu0 0
        %1313 = vmatpush1.bf16.xpose.msra.mxu0 0
        %1314 = vmatprep.subr.bf16.mxu0 0
        %1315 = vmatpush1.bf16.xpose.msra.mxu0 0
        %1316 = vmatprep.subr.bf16.mxu0 0
        %1317 = vmatpush1.bf16.xpose.msra.mxu0 0
        %1318 = vmatprep.subr.bf16.mxu0 0
        %1319 = vmatpush1.bf16.xpose.msra.mxu0 0
        %1320 = vmatprep.subr.bf16.mxu0 0
        %1321 = vmatpush1.bf16.xpose.msra.mxu0 0
        %1322 = vmatprep.subr.bf16.mxu0 0
        %1323 = vmatpush1.bf16.xpose.msra.mxu0 0
        %1324 = vmatprep.subr.bf16.mxu0 0
        %1325 = vmatpush1.bf16.xpose.msra.mxu0 0
        %1326 = vmatprep.subr.bf16.mxu0 0
        %1327 = vmatpush1.bf16.xpose.msra.mxu0 0
        %1328 = vmatprep.mubr.bf16.mxu0 0
        %1329 = vmatmul.mubr.bf16.gmra.mrb[0].mxu0 %v1291
        %v1330 = vpop.f32.mrb[0].mxu0
        %v1331 = vadd.f32 0.0, %v1330
        %v1332 = vpop.f32.mrb[0].mxu0
        %v1333 = vpop.f32.mrb[0].mxu0
        %v1334 = vpop.f32.mrb[0].mxu0
        %1335 = vdwg.mxu0
        %v1337 = vsel %vm1243, %v1233, 0
        %v1340 = vsel %vm1243, %v1237, 0
        %1342 = vmatprep.subr.bf16.mxu0 0
        %1343 = vmatpush1.bf16.xpose.msra.mxu0 %v1340
        %1344 = vmatprep.subr.bf16.mxu0 0
        %1345 = vmatpush1.bf16.xpose.msra.mxu0 0
        %1346 = vmatprep.subr.bf16.mxu0 0
        %1347 = vmatpush1.bf16.xpose.msra.mxu0 0
        %1348 = vmatprep.subr.bf16.mxu0 0
        %1349 = vmatpush1.bf16.xpose.msra.mxu0 0
        %1350 = vmatprep.subr.bf16.mxu0 0
        %1351 = vmatpush1.bf16.xpose.msra.mxu0 0
        %1352 = vmatprep.subr.bf16.mxu0 0
        %1353 = vmatpush1.bf16.xpose.msra.mxu0 0
        %1354 = vmatprep.subr.bf16.mxu0 0
        %1355 = vmatpush1.bf16.xpose.msra.mxu0 0
        %1356 = vmatprep.subr.bf16.mxu0 0
        %1357 = vmatpush1.bf16.xpose.msra.mxu0 0
        %1358 = vmatprep.subr.bf16.mxu0 0
        %1359 = vmatpush1.bf16.xpose.msra.mxu0 0
        %1360 = vmatprep.subr.bf16.mxu0 0
        %1361 = vmatpush1.bf16.xpose.msra.mxu0 0
        %1362 = vmatprep.subr.bf16.mxu0 0
        %1363 = vmatpush1.bf16.xpose.msra.mxu0 0
        %1364 = vmatprep.subr.bf16.mxu0 0
        %1365 = vmatpush1.bf16.xpose.msra.mxu0 0
        %1366 = vmatprep.subr.bf16.mxu0 0
        %1367 = vmatpush1.bf16.xpose.msra.mxu0 0
        %1368 = vmatprep.subr.bf16.mxu0 0
        %1369 = vmatpush1.bf16.xpose.msra.mxu0 0
        %1370 = vmatprep.subr.bf16.mxu0 0
        %1371 = vmatpush1.bf16.xpose.msra.mxu0 0
        %1372 = vmatprep.subr.bf16.mxu0 0
        %1373 = vmatpush1.bf16.xpose.msra.mxu0 0
        %1374 = vmatprep.mubr.bf16.mxu0 0
        %1375 = vmatmul.mubr.bf16.gmra.mrb[0].mxu0 %v1337
        %v1376 = vpop.f32.mrb[0].mxu0
        %v1377 = vadd.f32 0.0, %v1376
        %v1378 = vpop.f32.mrb[0].mxu0
        %v1379 = vpop.f32.mrb[0].mxu0
        %v1380 = vpop.f32.mrb[0].mxu0
        %1381 = vdwg.mxu0
        %v1383 = vsel %vm1243, %v1234, 0
        %v1386 = vsel %vm1243, %v1238, 0
        %1388 = vmatprep.subr.bf16.mxu0 0
        %1389 = vmatpush1.bf16.xpose.msra.mxu0 %v1386
        %1390 = vmatprep.subr.bf16.mxu0 0
        %1391 = vmatpush1.bf16.xpose.msra.mxu0 0
        %1392 = vmatprep.subr.bf16.mxu0 0
        %1393 = vmatpush1.bf16.xpose.msra.mxu0 0
        %1394 = vmatprep.subr.bf16.mxu0 0
        %1395 = vmatpush1.bf16.xpose.msra.mxu0 0
        %1396 = vmatprep.subr.bf16.mxu0 0
        %1397 = vmatpush1.bf16.xpose.msra.mxu0 0
        %1398 = vmatprep.subr.bf16.mxu0 0
        %1399 = vmatpush1.bf16.xpose.msra.mxu0 0
        %1400 = vmatprep.subr.bf16.mxu0 0
        %1401 = vmatpush1.bf16.xpose.msra.mxu0 0
        %1402 = vmatprep.subr.bf16.mxu0 0
        %1403 = vmatpush1.bf16.xpose.msra.mxu0 0
        %1404 = vmatprep.subr.bf16.mxu0 0
        %1405 = vmatpush1.bf16.xpose.msra.mxu0 0
        %1406 = vmatprep.subr.bf16.mxu0 0
        %1407 = vmatpush1.bf16.xpose.msra.mxu0 0
        %1408 = vmatprep.subr.bf16.mxu0 0
        %1409 = vmatpush1.bf16.xpose.msra.mxu0 0
        %1410 = vmatprep.subr.bf16.mxu0 0
        %1411 = vmatpush1.bf16.xpose.msra.mxu0 0
        %1412 = vmatprep.subr.bf16.mxu0 0
        %1413 = vmatpush1.bf16.xpose.msra.mxu0 0
        %1414 = vmatprep.subr.bf16.mxu0 0
        %1415 = vmatpush1.bf16.xpose.msra.mxu0 0
        %1416 = vmatprep.subr.bf16.mxu0 0
        %1417 = vmatpush1.bf16.xpose.msra.mxu0 0
        %1418 = vmatprep.subr.bf16.mxu0 0
        %1419 = vmatpush1.bf16.xpose.msra.mxu0 0
        %1420 = vmatprep.mubr.bf16.mxu0 0
        %1421 = vmatmul.mubr.bf16.gmra.mrb[0].mxu0 %v1383
        %v1422 = vpop.f32.mrb[0].mxu0
        %v1423 = vadd.f32 0.0, %v1422
        %v1424 = vpop.f32.mrb[0].mxu0
        %v1425 = vpop.f32.mrb[0].mxu0
        %v1426 = vpop.f32.mrb[0].mxu0
        %1427 = vdwg.mxu0
        %v1428 = vmul.f32 %v1285, 0.35355338
        %v1429 = vmul.f32 %v1331, 0.35355338
        %v1430 = vmul.f32 %v1377, 0.35355338
        %v1431 = vmul.f32 %v1423, 0.35355338
        %v1433 = vlaneseq
        %v1434 = vshrl.u32 %v1433, 7
        %v1435 = vsub.s32 0, %v1434
        %v1436 = vrot.slane %v720, %v1435
        %v1438 = vadd.f32 %v1428, %v1436
        %v1439 = vadd.f32 %v1429, %v1436
        %v1440 = vadd.f32 %v1430, %v1436
        %v1441 = vadd.f32 %v1431, %v1436
        %v1442 = vsel %vm1243, %v1438, -inf
        %1443 = vmax.xlane.f32.xlu0 %v1442
        %v1444 = vpop.xlane.xlu0 %1443
        %v1445 = vsel %vm1243, %v1439, -inf
        %1446 = vmax.xlane.f32.xlu0 %v1445
        %v1447 = vpop.xlane.xlu0 %1446
        %v1448 = vsel %vm1243, %v1440, -inf
        %1449 = vmax.xlane.f32.xlu0 %v1448
        %v1450 = vpop.xlane.xlu0 %1449
        %v1451 = vsel %vm1243, %v1441, -inf
        %1452 = vmax.xlane.f32.xlu0 %v1451
        %v1453 = vpop.xlane.xlu0 %1452
        %v1454 = vsub.f32 %v1438, %v1444
        %v1455 = vsub.f32 %v1439, %v1447
        %v1456 = vsub.f32 %v1440, %v1450
        %v1457 = vsub.f32 %v1441, %v1453
        %v1458 = vmul.f32 %v1454, 1.442695
        %v1459 = vpow.pop %v1458
        %v1460 = vmul.f32 %v1455, 1.442695
        %v1461 = vpow.pop %v1460
        %v1462 = vmul.f32 %v1456, 1.442695
        %v1463 = vpow.pop %v1462
        %v1464 = vmul.f32 %v1457, 1.442695
        %v1465 = vpow.pop %v1464
        %v1466 = vsel %vm1243, %v1459, 0.0
        %1467 = vadd.xlane.f32.xlu0 %v1466
        %v1468 = vpop.xlane.xlu0 %1467
        %v1469 = vsel %vm1243, %v1461, 0.0
        %1470 = vadd.xlane.f32.xlu0 %v1469
        %v1471 = vpop.xlane.xlu0 %1470
        %v1472 = vsel %vm1243, %v1463, 0.0
        %1473 = vadd.xlane.f32.xlu0 %v1472
        %v1474 = vpop.xlane.xlu0 %1473
        %v1475 = vsel %vm1243, %v1465, 0.0
        %1476 = vadd.xlane.f32.xlu0 %v1475
        %v1477 = vpop.xlane.xlu0 %1476
        %v1478 = vrcp.pop %v1468
        %v1479 = vrcp.pop %v1471
        %v1480 = vrcp.pop %v1474
        %v1481 = vrcp.pop %v1477
        %v1482 = vmul.f32 %v1459, %v1478
        %v1483 = vmul.f32 %v1461, %v1479
        %v1484 = vmul.f32 %v1463, %v1480
        %v1485 = vmul.f32 %v1465, %v1481
        %v1486 = vpack.c.bf16 %v1482, %v1482
        %v1487 = vpack.c.bf16 %v1483, %v1483
        %v1488 = vpack.c.bf16 %v1484, %v1484
        %v1489 = vpack.c.bf16 %v1485, %v1485
        %v1491 = vsel %vm1243, %v1486, 0
        %vm1493 = vcmask 1043456
        %v1495 = vsel %vm1493, %v1239, 0
        %1497 = vmatprep.subr.bf16.mxu0 0
        %1498 = vmatpush1.bf16.msra.mxu0 %v1495
        %1499 = vmatprep.subr.bf16.mxu0 0
        %1500 = vmatpush1.bf16.msra.mxu0 0
        %1501 = vmatprep.subr.bf16.mxu0 0
        %1502 = vmatpush1.bf16.msra.mxu0 0
        %1503 = vmatprep.subr.bf16.mxu0 0
        %1504 = vmatpush1.bf16.msra.mxu0 0
        %1505 = vmatprep.subr.bf16.mxu0 0
        %1506 = vmatpush1.bf16.msra.mxu0 0
        %1507 = vmatprep.subr.bf16.mxu0 0
        %1508 = vmatpush1.bf16.msra.mxu0 0
        %1509 = vmatprep.subr.bf16.mxu0 0
        %1510 = vmatpush1.bf16.msra.mxu0 0
        %1511 = vmatprep.subr.bf16.mxu0 0
        %1512 = vmatpush1.bf16.msra.mxu0 0
        %1513 = vmatprep.subr.bf16.mxu0 0
        %1514 = vmatpush1.bf16.msra.mxu0 0
        %1515 = vmatprep.subr.bf16.mxu0 0
        %1516 = vmatpush1.bf16.msra.mxu0 0
        %1517 = vmatprep.subr.bf16.mxu0 0
        %1518 = vmatpush1.bf16.msra.mxu0 0
        %1519 = vmatprep.subr.bf16.mxu0 0
        %1520 = vmatpush1.bf16.msra.mxu0 0
        %1521 = vmatprep.subr.bf16.mxu0 0
        %1522 = vmatpush1.bf16.msra.mxu0 0
        %1523 = vmatprep.subr.bf16.mxu0 0
        %1524 = vmatpush1.bf16.msra.mxu0 0
        %1525 = vmatprep.subr.bf16.mxu0 0
        %1526 = vmatpush1.bf16.msra.mxu0 0
        %1527 = vmatprep.subr.bf16.mxu0 0
        %1528 = vmatpush1.bf16.msra.mxu0 0
        %1529 = vmatprep.mubr.bf16.mxu0 0
        %1530 = vmatmul.mubr.bf16.gmra.mrb[0].mxu0 %v1491
        %v1531 = vpop.f32.mrb[0].mxu0
        %v1532 = vadd.f32 0.0, %v1531
        %v1533 = vpop.f32.mrb[0].mxu0
        %v1534 = vpop.f32.mrb[0].mxu0
        %v1535 = vpop.f32.mrb[0].mxu0
        %1536 = vdwg.mxu0
        %v1538 = vsel %vm1243, %v1487, 0
        %v1541 = vsel %vm1493, %v1240, 0
        %1543 = vmatprep.subr.bf16.mxu0 0
        %1544 = vmatpush1.bf16.msra.mxu0 %v1541
        %1545 = vmatprep.subr.bf16.mxu0 0
        %1546 = vmatpush1.bf16.msra.mxu0 0
        %1547 = vmatprep.subr.bf16.mxu0 0
        %1548 = vmatpush1.bf16.msra.mxu0 0
        %1549 = vmatprep.subr.bf16.mxu0 0
        %1550 = vmatpush1.bf16.msra.mxu0 0
        %1551 = vmatprep.subr.bf16.mxu0 0
        %1552 = vmatpush1.bf16.msra.mxu0 0
        %1553 = vmatprep.subr.bf16.mxu0 0
        %1554 = vmatpush1.bf16.msra.mxu0 0
        %1555 = vmatprep.subr.bf16.mxu0 0
        %1556 = vmatpush1.bf16.msra.mxu0 0
        %1557 = vmatprep.subr.bf16.mxu0 0
        %1558 = vmatpush1.bf16.msra.mxu0 0
        %1559 = vmatprep.subr.bf16.mxu0 0
        %1560 = vmatpush1.bf16.msra.mxu0 0
        %1561 = vmatprep.subr.bf16.mxu0 0
        %1562 = vmatpush1.bf16.msra.mxu0 0
        %1563 = vmatprep.subr.bf16.mxu0 0
        %1564 = vmatpush1.bf16.msra.mxu0 0
        %1565 = vmatprep.subr.bf16.mxu0 0
        %1566 = vmatpush1.bf16.msra.mxu0 0
        %1567 = vmatprep.subr.bf16.mxu0 0
        %1568 = vmatpush1.bf16.msra.mxu0 0
        %1569 = vmatprep.subr.bf16.mxu0 0
        %1570 = vmatpush1.bf16.msra.mxu0 0
        %1571 = vmatprep.subr.bf16.mxu0 0
        %1572 = vmatpush1.bf16.msra.mxu0 0
        %1573 = vmatprep.subr.bf16.mxu0 0
        %1574 = vmatpush1.bf16.msra.mxu0 0
        %1575 = vmatprep.mubr.bf16.mxu0 0
        %1576 = vmatmul.mubr.bf16.gmra.mrb[0].mxu0 %v1538
        %v1577 = vpop.f32.mrb[0].mxu0
        %v1578 = vadd.f32 0.0, %v1577
        %v1579 = vpop.f32.mrb[0].mxu0
        %v1580 = vpop.f32.mrb[0].mxu0
        %v1581 = vpop.f32.mrb[0].mxu0
        %1582 = vdwg.mxu0
        %v1584 = vsel %vm1243, %v1488, 0
        %v1587 = vsel %vm1493, %v1241, 0
        %1589 = vmatprep.subr.bf16.mxu0 0
        %1590 = vmatpush1.bf16.msra.mxu0 %v1587
        %1591 = vmatprep.subr.bf16.mxu0 0
        %1592 = vmatpush1.bf16.msra.mxu0 0
        %1593 = vmatprep.subr.bf16.mxu0 0
        %1594 = vmatpush1.bf16.msra.mxu0 0
        %1595 = vmatprep.subr.bf16.mxu0 0
        %1596 = vmatpush1.bf16.msra.mxu0 0
        %1597 = vmatprep.subr.bf16.mxu0 0
        %1598 = vmatpush1.bf16.msra.mxu0 0
        %1599 = vmatprep.subr.bf16.mxu0 0
        %1600 = vmatpush1.bf16.msra.mxu0 0
        %1601 = vmatprep.subr.bf16.mxu0 0
        %1602 = vmatpush1.bf16.msra.mxu0 0
        %1603 = vmatprep.subr.bf16.mxu0 0
        %1604 = vmatpush1.bf16.msra.mxu0 0
        %1605 = vmatprep.subr.bf16.mxu0 0
        %1606 = vmatpush1.bf16.msra.mxu0 0
        %1607 = vmatprep.subr.bf16.mxu0 0
        %1608 = vmatpush1.bf16.msra.mxu0 0
        %1609 = vmatprep.subr.bf16.mxu0 0
        %1610 = vmatpush1.bf16.msra.mxu0 0
        %1611 = vmatprep.subr.bf16.mxu0 0
        %1612 = vmatpush1.bf16.msra.mxu0 0
        %1613 = vmatprep.subr.bf16.mxu0 0
        %1614 = vmatpush1.bf16.msra.mxu0 0
        %1615 = vmatprep.subr.bf16.mxu0 0
        %1616 = vmatpush1.bf16.msra.mxu0 0
        %1617 = vmatprep.subr.bf16.mxu0 0
        %1618 = vmatpush1.bf16.msra.mxu0 0
        %1619 = vmatprep.subr.bf16.mxu0 0
        %1620 = vmatpush1.bf16.msra.mxu0 0
        %1621 = vmatprep.mubr.bf16.mxu0 0
        %1622 = vmatmul.mubr.bf16.gmra.mrb[0].mxu0 %v1584
        %v1623 = vpop.f32.mrb[0].mxu0
        %v1624 = vadd.f32 0.0, %v1623
        %v1625 = vpop.f32.mrb[0].mxu0
        %v1626 = vpop.f32.mrb[0].mxu0
        %v1627 = vpop.f32.mrb[0].mxu0
        %1628 = vdwg.mxu0
        %v1630 = vsel %vm1243, %v1489, 0
        %v1633 = vsel %vm1493, %v1242, 0
        %1635 = vmatprep.subr.bf16.mxu0 0
        %1636 = vmatpush1.bf16.msra.mxu0 %v1633
        %1637 = vmatprep.subr.bf16.mxu0 0
        %1638 = vmatpush1.bf16.msra.mxu0 0
        %1639 = vmatprep.subr.bf16.mxu0 0
        %1640 = vmatpush1.bf16.msra.mxu0 0
        %1641 = vmatprep.subr.bf16.mxu0 0
        %1642 = vmatpush1.bf16.msra.mxu0 0
        %1643 = vmatprep.subr.bf16.mxu0 0
        %1644 = vmatpush1.bf16.msra.mxu0 0
        %1645 = vmatprep.subr.bf16.mxu0 0
        %1646 = vmatpush1.bf16.msra.mxu0 0
        %1647 = vmatprep.subr.bf16.mxu0 0
        %1648 = vmatpush1.bf16.msra.mxu0 0
        %1649 = vmatprep.subr.bf16.mxu0 0
        %1650 = vmatpush1.bf16.msra.mxu0 0
        %1651 = vmatprep.subr.bf16.mxu0 0
        %1652 = vmatpush1.bf16.msra.mxu0 0
        %1653 = vmatprep.subr.bf16.mxu0 0
        %1654 = vmatpush1.bf16.msra.mxu0 0
        %1655 = vmatprep.subr.bf16.mxu0 0
        %1656 = vmatpush1.bf16.msra.mxu0 0
        %1657 = vmatprep.subr.bf16.mxu0 0
        %1658 = vmatpush1.bf16.msra.mxu0 0
        %1659 = vmatprep.subr.bf16.mxu0 0
        %1660 = vmatpush1.bf16.msra.mxu0 0
        %1661 = vmatprep.subr.bf16.mxu0 0
        %1662 = vmatpush1.bf16.msra.mxu0 0
        %1663 = vmatprep.subr.bf16.mxu0 0
        %1664 = vmatpush1.bf16.msra.mxu0 0
        %1665 = vmatprep.subr.bf16.mxu0 0
        %1666 = vmatpush1.bf16.msra.mxu0 0
        %1667 = vmatprep.mubr.bf16.mxu0 0
        %1668 = vmatmul.mubr.bf16.gmra.mrb[0].mxu0 %v1630
        %v1669 = vpop.f32.mrb[0].mxu0
        %v1670 = vadd.f32 0.0, %v1669
        %v1671 = vpop.f32.mrb[0].mxu0
        %v1672 = vpop.f32.mrb[0].mxu0
        %v1673 = vpop.f32.mrb[0].mxu0
        %1674 = vdwg.mxu0
        %v1675 = vcombine.low %v1532, %v1624
        %v1676 = vcombine.high %v1532, %v1624
        %v1678 = vunpack.c.l.s4 1983009808
        %v1679 = vunpack.c.0.s8 %v1678
        %v1680 = vlaneseq
        %v1681 = vshrl.u32 %v1680, 7
        %v1682 = vsub.s32 %v1679, %v1681
        %v1683 = vrot.slane %v1675, %v1682
        %v1685 = vunpack.c.l.s4 1983009808
        %v1686 = vunpack.c.0.s8 %v1685
        %v1687 = vlaneseq
        %v1688 = vshrl.u32 %v1687, 7
        %v1689 = vsub.s32 %v1686, %v1688
        %v1690 = vrot.slane %v1676, %v1689
        %v1691 = vcombine.low %v1578, %v1670
        %v1692 = vcombine.high %v1578, %v1670
        %v1694 = vunpack.c.l.s4 1983009808
        %v1695 = vunpack.c.0.s8 %v1694
        %v1696 = vlaneseq
        %v1697 = vshrl.u32 %v1696, 7
        %v1698 = vsub.s32 %v1695, %v1697
        %v1699 = vrot.slane %v1691, %v1698
        %v1701 = vunpack.c.l.s4 1983009808
        %v1702 = vunpack.c.0.s8 %v1701
        %v1703 = vlaneseq
        %v1704 = vshrl.u32 %v1703, 7
        %v1705 = vsub.s32 %v1702, %v1704
        %v1706 = vrot.slane %v1692, %v1705
        %v1707 = vcombine.low %v1683, %v1699
        %v1708 = vcombine.high %v1683, %v1699
        %v1710 = vunpack.c.l.s4 1934713408
        %v1711 = vunpack.c.0.s8 %v1710
        %v1712 = vlaneseq
        %v1713 = vshrl.u32 %v1712, 7
        %v1714 = vsub.s32 %v1711, %v1713
        %v1715 = vrot.slane %v1707, %v1714
        %v1717 = vunpack.c.l.s4 1934713408
        %v1718 = vunpack.c.0.s8 %v1717
        %v1719 = vlaneseq
        %v1720 = vshrl.u32 %v1719, 7
        %v1721 = vsub.s32 %v1718, %v1720
        %v1722 = vrot.slane %v1708, %v1721
        %v1723 = vcombine.low %v1690, %v1706
        %v1724 = vcombine.high %v1690, %v1706
        %v1726 = vunpack.c.l.s4 1934713408
        %v1727 = vunpack.c.0.s8 %v1726
        %v1728 = vlaneseq
        %v1729 = vshrl.u32 %v1728, 7
        %v1730 = vsub.s32 %v1727, %v1729
        %v1731 = vrot.slane %v1723, %v1730
        %v1733 = vunpack.c.l.s4 1934713408
        %v1734 = vunpack.c.0.s8 %v1733
        %v1735 = vlaneseq
        %v1736 = vshrl.u32 %v1735, 7
        %v1737 = vsub.s32 %v1734, %v1736
        %v1738 = vrot.slane %v1724, %v1737
        %v1739 = vcombine.high %v1715, 0.0
        %v1740 = vcombine.high %v1722, 0.0
        %v1741 = vcombine.high %v1731, 0.0
        %v1742 = vcombine.high %v1738, 0.0
        %v1743 = vcombine.low %v1715, %v1722
        %v1745 = vunpack.c.l.s4 1983009808
        %v1746 = vunpack.c.0.s8 %v1745
        %v1747 = vlaneseq
        %v1748 = vshrl.u32 %v1747, 7
        %v1749 = vsub.s32 %v1746, %v1748
        %v1750 = vrot.slane %v1743, %v1749
        %v1751 = vcombine.low %v1739, %v1740
        %v1753 = vunpack.c.l.s4 1983009808
        %v1754 = vunpack.c.0.s8 %v1753
        %v1755 = vlaneseq
        %v1756 = vshrl.u32 %v1755, 7
        %v1757 = vsub.s32 %v1754, %v1756
        %v1758 = vrot.slane %v1751, %v1757
        %v1759 = vcombine.low %v1731, %v1738
        %v1761 = vunpack.c.l.s4 1983009808
        %v1762 = vunpack.c.0.s8 %v1761
        %v1763 = vlaneseq
        %v1764 = vshrl.u32 %v1763, 7
        %v1765 = vsub.s32 %v1762, %v1764
        %v1766 = vrot.slane %v1759, %v1765
        %v1767 = vcombine.low %v1741, %v1742
        %v1769 = vunpack.c.l.s4 1983009808
        %v1770 = vunpack.c.0.s8 %v1769
        %v1771 = vlaneseq
        %v1772 = vshrl.u32 %v1771, 7
        %v1773 = vsub.s32 %v1770, %v1772
        %v1774 = vrot.slane %v1767, %v1773
        %v1775 = vcombine.low %v1750, %v1758
        %v1776 = vcombine.high %v1750, %v1758
        %v1778 = vunpack.c.l.s4 1934713408
        %v1779 = vunpack.c.0.s8 %v1778
        %v1780 = vlaneseq
        %v1781 = vshrl.u32 %v1780, 7
        %v1782 = vsub.s32 %v1779, %v1781
        %v1783 = vrot.slane %v1775, %v1782
        %v1785 = vunpack.c.l.s4 1934713408
        %v1786 = vunpack.c.0.s8 %v1785
        %v1787 = vlaneseq
        %v1788 = vshrl.u32 %v1787, 7
        %v1789 = vsub.s32 %v1786, %v1788
        %v1790 = vrot.slane %v1776, %v1789
        %v1791 = vcombine.low %v1766, %v1774
        %v1792 = vcombine.high %v1766, %v1774
        %v1794 = vunpack.c.l.s4 1934713408
        %v1795 = vunpack.c.0.s8 %v1794
        %v1796 = vlaneseq
        %v1797 = vshrl.u32 %v1796, 7
        %v1798 = vsub.s32 %v1795, %v1797
        %v1799 = vrot.slane %v1791, %v1798
        %v1801 = vunpack.c.l.s4 1934713408
        %v1802 = vunpack.c.0.s8 %v1801
        %v1803 = vlaneseq
        %v1804 = vshrl.u32 %v1803, 7
        %v1805 = vsub.s32 %v1802, %v1804
        %v1806 = vrot.slane %v1792, %v1805
        %v1807 = vcombine.low %v1783, %v1799
        %v1808 = vcombine.high %v1783, %v1799
        %v1809 = vcombine.low %v1790, %v1806
        %v1810 = vcombine.high %v1790, %v1806
        %1812 = vrot.lane.b32.xlu0 %v1808, 8
        %v1813 = vpop.permute.xlu0 %1812
        %1816 = vrot.lane.b32.xlu0 %v1809, 16
        %v1817 = vpop.permute.xlu0 %1816
        %1820 = vrot.lane.b32.xlu0 %v1810, 24
        %v1821 = vpop.permute.xlu0 %1820
        %v1823 = vsel %vm1243, %v1807, %v1813
        %vm1824 = vcmask 130048
        %v1825 = vsel %vm1824, %v1823, %v1817
        %vm1826 = vcmask 195584
        %v1827 = vsel %vm1826, %v1825, %v1821
        %v1828 = vpack.c.bf16 %v1827, %v1827
        %v1829 = vld [vmem:[%s676] sm:$0xf]
        %v1830 = vld [vmem:[%s676 + $0x4] sm:$0xf]
        %v1831 = vld [vmem:[%s676 + $0x8] sm:$0xf]
        %v1832 = vld [vmem:[%s676 + $0xc] sm:$0xf]
        %v1833 = vld [vmem:[%s679] sm:$0x1]
        %v1835 = vlaneseq
        %v1836 = vshrl.u32 %v1835, 7
        %v1837 = vsub.s32 0, %v1836
        %v1838 = vrot.slane %v1833, %v1837
        %v1844 = vunpack.c.l.b16 %v1829
        %v1845 = vunpack.c.l.b16 %v1830
        %v1846 = vunpack.c.l.b16 %v1831
        %v1847 = vunpack.c.l.b16 %v1832
        %v1848 = vpack.c.b16 %v1845, %v1844
        %v1849 = vpack.c.b16 %v1847, %v1846
        %v1853 = vsel %vm745, %v1828, 0
        %1855 = vmatprep.subr.bf16.mxu0 0
        %1856 = vmatpush1.bf16.msra.mxu0 %v1848
        %1857 = vmatprep.subr.bf16.mxu0 0
        %1858 = vmatpush1.bf16.msra.mxu0 %v1849
        %1859 = vmatprep.subr.bf16.mxu0 0
        %1860 = vmatpush1.bf16.msra.mxu0 0
        %1861 = vmatprep.subr.bf16.mxu0 0
        %1862 = vmatpush1.bf16.msra.mxu0 0
        %1863 = vmatprep.subr.bf16.mxu0 0
        %1864 = vmatpush1.bf16.msra.mxu0 0
        %1865 = vmatprep.subr.bf16.mxu0 0
        %1866 = vmatpush1.bf16.msra.mxu0 0
        %1867 = vmatprep.subr.bf16.mxu0 0
        %1868 = vmatpush1.bf16.msra.mxu0 0
        %1869 = vmatprep.subr.bf16.mxu0 0
        %1870 = vmatpush1.bf16.msra.mxu0 0
        %1871 = vmatprep.subr.bf16.mxu0 0
        %1872 = vmatpush1.bf16.msra.mxu0 0
        %1873 = vmatprep.subr.bf16.mxu0 0
        %1874 = vmatpush1.bf16.msra.mxu0 0
        %1875 = vmatprep.subr.bf16.mxu0 0
        %1876 = vmatpush1.bf16.msra.mxu0 0
        %1877 = vmatprep.subr.bf16.mxu0 0
        %1878 = vmatpush1.bf16.msra.mxu0 0
        %1879 = vmatprep.subr.bf16.mxu0 0
        %1880 = vmatpush1.bf16.msra.mxu0 0
        %1881 = vmatprep.subr.bf16.mxu0 0
        %1882 = vmatpush1.bf16.msra.mxu0 0
        %1883 = vmatprep.subr.bf16.mxu0 0
        %1884 = vmatpush1.bf16.msra.mxu0 0
        %1885 = vmatprep.subr.bf16.mxu0 0
        %1886 = vmatpush1.bf16.msra.mxu0 0
        %1887 = vmatprep.mubr.bf16.mxu0 0
        %1888 = vmatmul.mubr.bf16.gmra.mrb[0].mxu0 %v1853
        %v1889 = vpop.f32.mrb[0].mxu0
        %v1890 = vadd.f32 %v1838, %v1889
        %v1891 = vpop.f32.mrb[0].mxu0
        %v1892 = vpop.f32.mrb[0].mxu0
        %v1893 = vpop.f32.mrb[0].mxu0
        %1894 = vdwg.mxu0
        %v1895 = vadd.f32 %v719, %v1890
        %v1896 = vld [vmem:[%s698] sm:$0x1]
        %v1897 = vld [vmem:[%s701] sm:$0x1]
        %v1898 = vsel %vm745, %v1895, 0.0
        %1899 = vadd.xlane.f32.xlu0 %v1898
        %v1900 = vpop.xlane.xlu0 %1899
        %v1901 = vrcp.pop 32.0
        %v1902 = vmul.f32 %v1900, %v1901
        %v1903 = vsub.f32 %v1895, %v1902
        %v1904 = vmul.f32 %v1903, %v1903
        %v1905 = vsel %vm745, %v1904, 0.0
        %1906 = vadd.xlane.f32.xlu0 %v1905
        %v1907 = vpop.xlane.xlu0 %1906
        %v1908 = vmul.f32 %v1907, %v1901
        %v1909 = vadd.f32 %v1908, 1e-06
        %v1910 = vrsqrt.pop %v1909
        %v1911 = vmul.f32 %v1903, %v1910
        %v1913 = vlaneseq
        %v1914 = vshrl.u32 %v1913, 7
        %v1915 = vsub.s32 0, %v1914
        %v1916 = vrot.slane %v1896, %v1915
        %v1918 = vmul.f32 %v1911, %v1916
        %v1920 = vlaneseq
        %v1921 = vshrl.u32 %v1920, 7
        %v1922 = vsub.s32 0, %v1921
        %v1923 = vrot.slane %v1897, %v1922
        %v1925 = vadd.f32 %v1918, %v1923
        %v1926 = vpack.c.bf16 %v1925, %v1925
        %v1927 = vld [vmem:[%s684] sm:$0xf]
        %v1928 = vld [vmem:[%s684 + $0x4] sm:$0xf]
        %v1929 = vld [vmem:[%s684 + $0x8] sm:$0xf]
        %v1930 = vld [vmem:[%s684 + $0xc] sm:$0xf]
        %v1931 = vld [vmem:[%s687] sm:$0x1]
        %v1933 = vlaneseq
        %v1934 = vshrl.u32 %v1933, 7
        %v1935 = vsub.s32 0, %v1934
        %v1936 = vrot.slane %v1931, %v1935
        %v1942 = vunpack.c.l.b16 %v1927
        %v1943 = vunpack.c.l.b16 %v1928
        %v1944 = vunpack.c.l.b16 %v1929
        %v1945 = vunpack.c.l.b16 %v1930
        %v1946 = vpack.c.b16 %v1943, %v1942
        %v1947 = vpack.c.b16 %v1945, %v1944
        %v1951 = vsel %vm745, %v1926, 0
        %1953 = vmatprep.subr.bf16.mxu0 0
        %1954 = vmatpush1.bf16.msra.mxu0 %v1946
        %1955 = vmatprep.subr.bf16.mxu0 0
        %1956 = vmatpush1.bf16.msra.mxu0 %v1947
        %1957 = vmatprep.subr.bf16.mxu0 0
        %1958 = vmatpush1.bf16.msra.mxu0 0
        %1959 = vmatprep.subr.bf16.mxu0 0
        %1960 = vmatpush1.bf16.msra.mxu0 0
        %1961 = vmatprep.subr.bf16.mxu0 0
        %1962 = vmatpush1.bf16.msra.mxu0 0
        %1963 = vmatprep.subr.bf16.mxu0 0
        %1964 = vmatpush1.bf16.msra.mxu0 0
        %1965 = vmatprep.subr.bf16.mxu0 0
        %1966 = vmatpush1.bf16.msra.mxu0 0
        %1967 = vmatprep.subr.bf16.mxu0 0
        %1968 = vmatpush1.bf16.msra.mxu0 0
        %1969 = vmatprep.subr.bf16.mxu0 0
        %1970 = vmatpush1.bf16.msra.mxu0 0
        %1971 = vmatprep.subr.bf16.mxu0 0
        %1972 = vmatpush1.bf16.msra.mxu0 0
        %1973 = vmatprep.subr.bf16.mxu0 0
        %1974 = vmatpush1.bf16.msra.mxu0 0
        %1975 = vmatprep.subr.bf16.mxu0 0
        %1976 = vmatpush1.bf16.msra.mxu0 0
        %1977 = vmatprep.subr.bf16.mxu0 0
        %1978 = vmatpush1.bf16.msra.mxu0 0
        %1979 = vmatprep.subr.bf16.mxu0 0
        %1980 = vmatpush1.bf16.msra.mxu0 0
        %1981 = vmatprep.subr.bf16.mxu0 0
        %1982 = vmatpush1.bf16.msra.mxu0 0
        %1983 = vmatprep.subr.bf16.mxu0 0
        %1984 = vmatpush1.bf16.msra.mxu0 0
        %1985 = vmatprep.mubr.bf16.mxu0 0
        %1986 = vmatmul.mubr.bf16.gmra.mrb[0].mxu0 %v1951
        %v1987 = vpop.f32.mrb[0].mxu0
        %v1988 = vadd.f32 %v1936, %v1987
        %v1989 = vpop.f32.mrb[0].mxu0
        %v1990 = vpop.f32.mrb[0].mxu0
        %v1991 = vpop.f32.mrb[0].mxu0
        %1992 = vdwg.mxu0
        %v1993 = vmax.f32 %v1988, 0.0
        %v1994 = vpack.c.bf16 %v1993, %v1993
        %v1995 = vld [vmem:[%s692] sm:$0xf]
        %v1996 = vld [vmem:[%s692 + $0x4] sm:$0xf]
        %v1997 = vld [vmem:[%s692 + $0x8] sm:$0xf]
        %v1998 = vld [vmem:[%s692 + $0xc] sm:$0xf]
        %v1999 = vld [vmem:[%s692 + $0x10] sm:$0xf]
        %v2000 = vld [vmem:[%s692 + $0x14] sm:$0xf]
        %v2001 = vld [vmem:[%s692 + $0x18] sm:$0xf]
        %v2002 = vld [vmem:[%s692 + $0x1c] sm:$0xf]
        %v2003 = vld [vmem:[%s695] sm:$0x1]
        %v2005 = vlaneseq
        %v2006 = vshrl.u32 %v2005, 7
        %v2007 = vsub.s32 0, %v2006
        %v2008 = vrot.slane %v2003, %v2007
        %v2018 = vunpack.c.l.b16 %v1995
        %v2019 = vunpack.c.l.b16 %v1996
        %v2020 = vunpack.c.l.b16 %v1997
        %v2021 = vunpack.c.l.b16 %v1998
        %v2022 = vunpack.c.l.b16 %v1999
        %v2023 = vunpack.c.l.b16 %v2000
        %v2024 = vunpack.c.l.b16 %v2001
        %v2025 = vunpack.c.l.b16 %v2002
        %v2026 = vpack.c.b16 %v2019, %v2018
        %v2027 = vpack.c.b16 %v2021, %v2020
        %v2028 = vpack.c.b16 %v2023, %v2022
        %v2029 = vpack.c.b16 %v2025, %v2024
        %vm2034 = vcmask 523264
        %v2036 = vsel %vm2034, %v1994, 0
        %2038 = vmatprep.subr.bf16.mxu0 0
        %2039 = vmatpush1.bf16.msra.mxu0 %v2026
        %2040 = vmatprep.subr.bf16.mxu0 0
        %2041 = vmatpush1.bf16.msra.mxu0 %v2027
        %2042 = vmatprep.subr.bf16.mxu0 0
        %2043 = vmatpush1.bf16.msra.mxu0 %v2028
        %2044 = vmatprep.subr.bf16.mxu0 0
        %2045 = vmatpush1.bf16.msra.mxu0 %v2029
        %2046 = vmatprep.subr.bf16.mxu0 0
        %2047 = vmatpush1.bf16.msra.mxu0 0
        %2048 = vmatprep.subr.bf16.mxu0 0
        %2049 = vmatpush1.bf16.msra.mxu0 0
        %2050 = vmatprep.subr.bf16.mxu0 0
        %2051 = vmatpush1.bf16.msra.mxu0 0
        %2052 = vmatprep.subr.bf16.mxu0 0
        %2053 = vmatpush1.bf16.msra.mxu0 0
        %2054 = vmatprep.subr.bf16.mxu0 0
        %2055 = vmatpush1.bf16.msra.mxu0 0
        %2056 = vmatprep.subr.bf16.mxu0 0
        %2057 = vmatpush1.bf16.msra.mxu0 0
        %2058 = vmatprep.subr.bf16.mxu0 0
        %2059 = vmatpush1.bf16.msra.mxu0 0
        %2060 = vmatprep.subr.bf16.mxu0 0
        %2061 = vmatpush1.bf16.msra.mxu0 0
        %2062 = vmatprep.subr.bf16.mxu0 0
        %2063 = vmatpush1.bf16.msra.mxu0 0
        %2064 = vmatprep.subr.bf16.mxu0 0
        %2065 = vmatpush1.bf16.msra.mxu0 0
        %2066 = vmatprep.subr.bf16.mxu0 0
        %2067 = vmatpush1.bf16.msra.mxu0 0
        %2068 = vmatprep.subr.bf16.mxu0 0
        %2069 = vmatpush1.bf16.msra.mxu0 0
        %2070 = vmatprep.mubr.bf16.mxu0 0
        %2071 = vmatmul.mubr.bf16.gmra.mrb[0].mxu0 %v2036
        %v2072 = vpop.f32.mrb[0].mxu0
        %v2073 = vadd.f32 %v2008, %v2072
        %v2074 = vpop.f32.mrb[0].mxu0
        %v2075 = vpop.f32.mrb[0].mxu0
        %v2076 = vpop.f32.mrb[0].mxu0
        %2077 = vdwg.mxu0
        %v2078 = vadd.f32 %v1925, %v2073
        %v2079 = vld [vmem:[%s704] sm:$0x1]
        %v2080 = vld [vmem:[%s707] sm:$0x1]
        %v2081 = vsel %vm745, %v2078, 0.0
        %2082 = vadd.xlane.f32.xlu0 %v2081
        %v2083 = vpop.xlane.xlu0 %2082
        %v2084 = vmul.f32 %v2083, %v1901
        %v2085 = vsub.f32 %v2078, %v2084
        %v2086 = vmul.f32 %v2085, %v2085
        %v2087 = vsel %vm745, %v2086, 0.0
        %2088 = vadd.xlane.f32.xlu0 %v2087
        %v2089 = vpop.xlane.xlu0 %2088
        %v2090 = vmul.f32 %v2089, %v1901
        %v2091 = vadd.f32 %v2090, 1e-06
        %v2092 = vrsqrt.pop %v2091
        %v2093 = vmul.f32 %v2085, %v2092
        %v2095 = vlaneseq
        %v2096 = vshrl.u32 %v2095, 7
        %v2097 = vsub.s32 0, %v2096
        %v2098 = vrot.slane %v2079, %v2097
        %v2100 = vmul.f32 %v2093, %v2098
        %v2102 = vlaneseq
        %v2103 = vshrl.u32 %v2102, 7
        %v2104 = vsub.s32 0, %v2103
        %v2105 = vrot.slane %v2080, %v2104
        %v2107 = vadd.f32 %v2100, %v2105
        %2108 = vst.msk [vmem:[#allocation2] sm:$0xff] %vm745, %v2107
        %p2109 = scmp.eq.s32.totalorder %s34, 1
        // Predicated region
        $region85: #{encoder_forward.1} parent=79 // pred_check
          %p2110 = pneg %p2109
        $region86: #{encoder_forward.1} parent=79 // pred_check_branch
          %2112 = sbr.rel (%p2110) target = $region88
        $region87: #{encoder_forward.1} parent=79 // pred_region
          %2113 = vst.msk [vmem:[%s656] sm:$0xff] %vm745, %v2107
        $region88: #{encoder_forward.1} parent=79 // pred_fallthru
          _
        %s2114 = sand.u32 %s434, 1
        %s2115 = scalar_lea.sflag [#allocation4], %s2114
        %s2116 = sand.u32 %s434, 1
        %s2117 = smul.addr %s2116, 8
        %s2118 = scalar_lea.vmem [#allocation3], %s2117
        // Predicated region
        $region89: #{encoder_forward.1} parent=79 // pred_check
          %p2119 = pneg %p444
        $region90: #{encoder_forward.1} parent=79 // pred_check_branch
          %2121 = sbr.rel (%p2119) target = $region92
        $region91: #{encoder_forward.1} parent=79 // pred_region
          %s2123 = ssub.s32 128, 128
          %2124 = vsyncadd %s2115, %s2123
          %s2125 = smul.addr %s33, 128
          %s2126 = scalar_lea.hbm %s15, %s2125
          %s2128 = sshll.u32 %s2118, 4
          %s2129 = int_to_ptr.vmem [resolvable:$true] %s2128
          %2131 = dma.vmem_to_hbm [thread:$0]  %s2129, 128, %s2126, %s2115
        $region92: #{encoder_forward.1} parent=79 // pred_fallthru
          _
      $region80: #{encoder_forward.1} parent=5 // pred_fallthru
        _
      %p2132 = scmp.le.s32.totalorder 2, %s24
      // Predicated region
      $region93: #{encoder_forward.1} parent=5 // pred_check
        %p2133 = pneg %p2132
      $region94: #{encoder_forward.1} parent=5 // pred_check_branch
        %2135 = sbr.rel (%p2133) target = $region96
      $region95: #{encoder_forward.1} parent=5 // pred_region
        %s2136 = ssub.s32 %s24, 2
        // Predicated region
        $region97: #{encoder_forward.1} parent=95 // pred_check
          %p2137 = pneg %p450
        $region98: #{encoder_forward.1} parent=95 // pred_check_branch
          %2139 = sbr.rel (%p2137) target = $region100
        $region99: #{encoder_forward.1} parent=95 // pred_region
          %s2140 = sand.u32 %s435, 1
          %s2141 = scalar_lea.sflag [#allocation4], %s2140
          %s2142 = sand.u32 %s435, 1
          %s2143 = smul.addr %s2142, 8
          %s2144 = scalar_lea.vmem [#allocation3], %s2143
          %2145 = dma.done %s2141, 128
        $region100: #{encoder_forward.1} parent=95 // pred_fallthru
          _
      $region96: #{encoder_forward.1} parent=5 // pred_fallthru
        _
    $region6: #{encoder_forward.1} parent=1 // loop_footer
      %s28 = sadd.s32 1, %s24
    $region7: #{encoder_forward.1} parent=1 // loop_footer_branch
      %23 = sbr.rel target = $region3
    $region8: #{encoder_forward.1} parent=1 // loop_exit
      _
    %2146 = vsyncpa [#allocation4], 1
    %s2147 = scalar_lea.sflag [#allocation4], 1
    %2148 = vsyncpa %s2147, 1

</llo_original>
